<compile_context>
chip_gen: v7x
topology: tpu7x:2x2x1
jax: 0.10.0
libtpu: 0.0.40
codegen_flags: <defaults>
</compile_context>

<pallas_src>
import functools

import jax
import jax.numpy as jnp
from jax.experimental import pallas as pl
from jax.experimental.pallas import tpu as pltpu


def _fdss_kernel(H, W, C,
                 x_ref, w1_ref, b1_ref, w2_ref, b2_ref,
                 dwv_ref, dbv_ref, dwh_ref, dbh_ref,
                 out_ref):
    HW = H * W
    x = x_ref[0]  # (C, HW): channels on sublanes, pixels lane-dense.

    # Boundary masks for roll-based spatial shifts (built once, shared by all taps).
    lane = jax.lax.broadcasted_iota(jnp.int32, (1, HW), 1)
    col = lane % W
    row_ok = {-1: lane >= W, 0: None, 1: lane < (HW - W)}
    col_ok = {-1: col >= 1, 0: None, 1: col < (W - 1)}

    def shifted(z, dy, dx):
        """z[c, h+dy, w+dx] with zero padding, in flattened (C, H*W) layout."""
        d = dy * W + dx
        r = z if d == 0 else pltpu.roll(z, (-d) % HW, axis=1)
        m = row_ok[dy]
        if col_ok[dx] is not None:
            m = col_ok[dx] if m is None else (m & col_ok[dx])
        if m is not None:
            r = jnp.where(m, r, 0.0)
        return r

    # conv1 (1x1): a single channel matmul on the MXU.
    y1 = jnp.dot(w1_ref[...], x, preferred_element_type=jnp.float32) + b1_ref[...]

    # conv2 (3x3, pad 1): 9 roll-shifted multiply-accumulate matmuls.
    acc = jnp.zeros((C, HW), jnp.float32)
    for ky in range(3):
        for kx in range(3):
            acc = acc + jnp.dot(w2_ref[ky * 3 + kx],
                                shifted(y1, ky - 1, kx - 1),
                                preferred_element_type=jnp.float32)
    y2 = acc + b2_ref[...]

    # Depthwise (3,1) then (1,3) convs.  Channel shuffle / split / concat are
    # folded into the (interleaved) per-channel weights, so all C channels are
    # processed together on the VPU.
    def dwconv(z, w_ref, b_ref, vertical):
        w0 = w_ref[:, 0:1]
        w1_ = w_ref[:, 1:2]
        w2_ = w_ref[:, 2:3]
        if vertical:
            a, c = shifted(z, -1, 0), shifted(z, 1, 0)
        else:
            a, c = shifted(z, 0, -1), shifted(z, 0, 1)
        return a * w0 + z * w1_ + c * w2_ + b_ref[...]

    t = dwconv(y2, dwv_ref, dbv_ref, vertical=True)
    t = dwconv(t, dwh_ref, dbh_ref, vertical=False)

    # Residual add; channel order is already the shuffled order.
    out_ref[0] = y1 + t


_PARAM_ORDER = ("w1", "b1", "w2", "b2", "dwv", "dbv", "dwh", "dbh")


def fdss_nbt_forward(x_nchw, kparams):
    B, C, H, W = x_nchw.shape
    HW = H * W
    x = x_nchw.reshape(B, C, HW).astype(jnp.float32)  # free view, no HBM pass

    kernel = functools.partial(_fdss_kernel, H, W, C)

    def full_spec(arr):
        n = arr.ndim
        return pl.BlockSpec(arr.shape, lambda b, _n=n: (0,) * _n)

    weights = [kparams[k] for k in _PARAM_ORDER]
    out = pl.pallas_call(
        kernel,
        out_shape=jax.ShapeDtypeStruct((B, C, HW), jnp.float32),
        grid=(B,),
        in_specs=[pl.BlockSpec((1, C, HW), lambda b: (b, 0, 0))]
                 + [full_spec(w) for w in weights],
        out_specs=pl.BlockSpec((1, C, HW), lambda b: (b, 0, 0)),
        compiler_params=pltpu.CompilerParams(
            dimension_semantics=("parallel",)),
    )(x, *weights)
    return out.reshape(B, C, H, W)  # free view, no HBM pass


def init_params(key, C):
    """Deterministic synthetic weights in PyTorch layouts + kernel layouts."""
    assert C % 2 == 0
    Ch = C // 2
    ks = jax.random.split(key, 12)

    def u(k, shape, scale=0.3):
        return jax.random.uniform(k, shape, jnp.float32, -scale, scale)

    w1_t = u(ks[0], (C, C, 1, 1));      b1 = u(ks[1], (C,))
    w2_t = u(ks[2], (C, C, 3, 3));      b2 = u(ks[3], (C,))
    dw31_t = u(ks[4], (Ch, 1, 3, 1));   db31 = u(ks[5], (Ch,))
    dw13_t = u(ks[6], (Ch, 1, 1, 3));   db13 = u(ks[7], (Ch,))
    ddw31_t = u(ks[8], (Ch, 1, 3, 1));  ddb31 = u(ks[9], (Ch,))
    ddw13_t = u(ks[10], (Ch, 1, 1, 3)); ddb13 = u(ks[11], (Ch,))

    torch_params = dict(w1=w1_t, b1=b1, w2=w2_t, b2=b2,
                        dw31=dw31_t, db31=db31, dw13=dw13_t, db13=db13,
                        ddw31=ddw31_t, ddb31=ddb31, ddw13=ddw13_t, ddb13=ddb13)

    # Channel_shuffle(groups=2): output channel c pulls from sigma(c).
    c_idx = jnp.arange(C)
    sigma = (c_idx % 2) * Ch + c_idx // 2

    # conv1 / conv2 with channels pre-permuted so the kernel emits shuffled order.
    w1p = w1_t[:, :, 0, 0][sigma, :]                              # (C_out, C_in)
    b1p = b1[sigma].reshape(C, 1)
    w2_perm = w2_t[sigma][:, sigma]                               # (C, C, 3, 3)
    w2p = jnp.transpose(w2_perm, (2, 3, 0, 1)).reshape(9, C, C)   # (tap, O, I)
    b2p = b2[sigma].reshape(C, 1)

    # Depthwise weights interleaved: even channels = dw path, odd = ddw path.
    dwv = jnp.stack([dw31_t[:, 0, :, 0], ddw31_t[:, 0, :, 0]], axis=1).reshape(C, 3)
    dbv = jnp.stack([db31, ddb31], axis=1).reshape(C, 1)
    dwh = jnp.stack([dw13_t[:, 0, 0, :], ddw13_t[:, 0, 0, :]], axis=1).reshape(C, 3)
    dbh = jnp.stack([db13, ddb13], axis=1).reshape(C, 1)

    kernel_params = dict(w1=w1p, b1=b1p, w2=w2p, b2=b2p,
                         dwv=dwv, dbv=dbv, dwh=dwh, dbh=dbh)
    return kernel_params, torch_params


def ref_forward(x_nchw, tp):
    """Pure-JAX reference matching the PyTorch module semantics."""
    x = jnp.transpose(x_nchw, (0, 2, 3, 1))
    C = x.shape[-1]
    Ch = C // 2
    dn = ('NHWC', 'HWIO', 'NHWC')

    def conv(x, w_oihw, b, padding, groups=1):
        w = jnp.transpose(w_oihw, (2, 3, 1, 0))  # HWIO
        y = jax.lax.conv_general_dilated(
            x, w, (1, 1), padding, dimension_numbers=dn,
            feature_group_count=groups,
            precision=jax.lax.Precision.HIGHEST)
        return y + b

    y1 = conv(x, tp['w1'], tp['b1'], 'VALID')
    y2 = conv(y1, tp['w2'], tp['b2'], ((1, 1), (1, 1)))
    x1 = y2[..., :Ch]
    x2 = y2[..., Ch:]
    x1 = conv(x1, tp['dw31'], tp['db31'], ((1, 1), (0, 0)), groups=Ch)
    x1 = conv(x1, tp['dw13'], tp['db13'], ((0, 0), (1, 1)), groups=Ch)
    x2 = conv(x2, tp['ddw31'], tp['ddb31'], ((1, 1), (0, 0)), groups=Ch)
    x2 = conv(x2, tp['ddw13'], tp['ddb13'], ((0, 0), (1, 1)), groups=Ch)
    out = y1 + jnp.concatenate([x1, x2], axis=-1)
    B, H, W, _ = out.shape
    out = out.reshape(B, H, W, 2, Ch).transpose(0, 1, 2, 4, 3).reshape(B, H, W, C)
    return jnp.transpose(out, (0, 3, 1, 2))


if __name__ == "__main__":
    key = jax.random.PRNGKey(0)
    B, C, H, W = 2, 4, 16, 16
    kx, kp = jax.random.split(key)
    x = jax.random.normal(kx, (B, C, H, W), jnp.float32)
    kernel_params, torch_params = init_params(kp, C)

    out = fdss_nbt_forward(x, kernel_params)
    out = jax.block_until_ready(out)

    ref = ref_forward(x, torch_params)
    assert out.shape == (B, C, H, W), out.shape
    max_err = float(jnp.max(jnp.abs(out - ref)))
    assert max_err < 2e-4, f"max abs err {max_err}"
    print("KERNEL_OK")
</pallas_src>

<mosaic_0001>
module attributes {stable_mosaic.version = 11 : i64} {
  func.func @_fdss_kernel(%arg0: i32, %arg1: memref<1x4x256xf32, #tpu.memory_space<vmem>>, %arg2: memref<4x4xf32, #tpu.memory_space<vmem>>, %arg3: memref<4x1xf32, #tpu.memory_space<vmem>>, %arg4: memref<9x4x4xf32, #tpu.memory_space<vmem>>, %arg5: memref<4x1xf32, #tpu.memory_space<vmem>>, %arg6: memref<4x3xf32, #tpu.memory_space<vmem>>, %arg7: memref<4x1xf32, #tpu.memory_space<vmem>>, %arg8: memref<4x3xf32, #tpu.memory_space<vmem>>, %arg9: memref<4x1xf32, #tpu.memory_space<vmem>>, %arg10: memref<1x4x256xf32, #tpu.memory_space<vmem>>) attributes {dimension_semantics = [#tpu.dimension_semantics<parallel>], iteration_bounds = array<i64: 2>, scalar_prefetch = 0 : i64, scratch_operands = 0 : i64, tpu.core_type = #tpu.core_type<tc>, window_params = [{transform_indices = @transform_0, window_bounds = array<i64: 1, 4, 256>}, {pipeline_mode = #tpu.pipeline_mode<synchronous>, transform_indices = @transform_1, window_bounds = array<i64: 4, 4>}, {pipeline_mode = #tpu.pipeline_mode<synchronous>, transform_indices = @transform_2, window_bounds = array<i64: 4, 1>}, {pipeline_mode = #tpu.pipeline_mode<synchronous>, transform_indices = @transform_3, window_bounds = array<i64: 9, 4, 4>}, {pipeline_mode = #tpu.pipeline_mode<synchronous>, transform_indices = @transform_4, window_bounds = array<i64: 4, 1>}, {pipeline_mode = #tpu.pipeline_mode<synchronous>, transform_indices = @transform_5, window_bounds = array<i64: 4, 3>}, {pipeline_mode = #tpu.pipeline_mode<synchronous>, transform_indices = @transform_6, window_bounds = array<i64: 4, 1>}, {pipeline_mode = #tpu.pipeline_mode<synchronous>, transform_indices = @transform_7, window_bounds = array<i64: 4, 3>}, {pipeline_mode = #tpu.pipeline_mode<synchronous>, transform_indices = @transform_8, window_bounds = array<i64: 4, 1>}, {transform_indices = @transform_9, window_bounds = array<i64: 1, 4, 256>}]} {
    %c0 = arith.constant 0 : index
    %c0_0 = arith.constant 0 : index
    %c0_1 = arith.constant 0 : index
    %0 = vector.load %arg1[%c0, %c0_0, %c0_1] : memref<1x4x256xf32, #tpu.memory_space<vmem>>, vector<1x4x256xf32>
    %1 = vector.shape_cast %0 : vector<1x4x256xf32> to vector<4x256xf32>
    %2 = tpu.iota {dimensions = array<i32: 1>} : vector<1x256xi32>
    %c16_i32 = arith.constant 16 : i32
    %c0_i32 = arith.constant 0 : i32
    %3 = arith.cmpi eq, %c16_i32, %c0_i32 : i32
    %c1_i32 = arith.constant 1 : i32
    %4 = arith.select %3, %c1_i32, %c16_i32 : i32
    %5 = vector.broadcast %4 : i32 to vector<1x256xi32>
    %6 = arith.remsi %2, %5 : vector<1x256xi32>
    %c0_i32_2 = arith.constant 0 : i32
    %7 = vector.broadcast %c0_i32_2 : i32 to vector<1x256xi32>
    %8 = arith.cmpi ne, %6, %7 : vector<1x256xi32>
    %c0_i32_3 = arith.constant 0 : i32
    %9 = vector.broadcast %c0_i32_3 : i32 to vector<1x256xi32>
    %10 = arith.cmpi slt, %6, %9 : vector<1x256xi32>
    %c0_i32_4 = arith.constant 0 : i32
    %11 = arith.cmpi slt, %4, %c0_i32_4 : i32
    %12 = vector.broadcast %11 : i1 to vector<1x256xi1>
    %13 = vector.broadcast %12 : vector<1x256xi1> to vector<1x256xi1>
    %14 = arith.xori %10, %13 : vector<1x256xi1>
    %15 = arith.andi %14, %8 : vector<1x256xi1>
    %16 = vector.broadcast %4 : i32 to vector<1x256xi32>
    %17 = arith.addi %6, %16 : vector<1x256xi32>
    %18 = arith.select %15, %17, %6 : vector<1x256xi1>, vector<1x256xi32>
    %c16_i32_5 = arith.constant 16 : i32
    %19 = vector.broadcast %c16_i32_5 : i32 to vector<1x256xi32>
    %20 = arith.cmpi sge, %2, %19 : vector<1x256xi32>
    %c240_i32 = arith.constant 240 : i32
    %21 = vector.broadcast %c240_i32 : i32 to vector<1x256xi32>
    %22 = arith.cmpi slt, %2, %21 : vector<1x256xi32>
    %c1_i32_6 = arith.constant 1 : i32
    %23 = vector.broadcast %c1_i32_6 : i32 to vector<1x256xi32>
    %24 = arith.cmpi sge, %18, %23 : vector<1x256xi32>
    %c15_i32 = arith.constant 15 : i32
    %25 = vector.broadcast %c15_i32 : i32 to vector<1x256xi32>
    %26 = arith.cmpi slt, %18, %25 : vector<1x256xi32>
    %c0_7 = arith.constant 0 : index
    %c0_8 = arith.constant 0 : index
    %27 = vector.load %arg2[%c0_7, %c0_8] : memref<4x4xf32, #tpu.memory_space<vmem>>, vector<4x4xf32>
    %cst = arith.constant dense<0.000000e+00> : vector<4x256xf32>
    %28 = tpu.matmul %27, %1, %cst {dimension_numbers = #tpu.dot_dimension_numbers<[1], [0], [0], [1], [0, 0, 1, 1], [], []>} : vector<4x4xf32>, vector<4x256xf32>, vector<4x256xf32> -> vector<4x256xf32>
    %c0_9 = arith.constant 0 : index
    %c0_10 = arith.constant 0 : index
    %29 = vector.load %arg3[%c0_9, %c0_10] : memref<4x1xf32, #tpu.memory_space<vmem>>, vector<4x1xf32>
    %30 = vector.broadcast %29 : vector<4x1xf32> to vector<4x256xf32>
    %31 = arith.addf %28, %30 : vector<4x256xf32>
    %cst_11 = arith.constant 0.000000e+00 : f32
    %32 = vector.broadcast %cst_11 : f32 to vector<4x256xf32>
    %c0_12 = arith.constant 0 : index
    %c0_13 = arith.constant 0 : index
    %c0_14 = arith.constant 0 : index
    %33 = vector.load %arg4[%c0_12, %c0_13, %c0_14] : memref<9x4x4xf32, #tpu.memory_space<vmem>>, vector<1x4x4xf32>
    %34 = vector.shape_cast %33 : vector<1x4x4xf32> to vector<4x4xf32>
    %c17_i32 = arith.constant 17 : i32
    %35 = tpu.dynamic_rotate %31 by %c17_i32 dim 1 : vector<4x256xf32>, i32 -> vector<4x256xf32>
    %36 = arith.andi %20, %24 : vector<1x256xi1>
    %cst_15 = arith.constant 0.000000e+00 : f32
    %37 = vector.shape_cast %36 : vector<1x256xi1> to vector<1x256xi1>
    %38 = vector.broadcast %37 : vector<1x256xi1> to vector<4x256xi1>
    %39 = vector.broadcast %cst_15 : f32 to vector<4x256xf32>
    %40 = arith.select %38, %35, %39 : vector<4x256xi1>, vector<4x256xf32>
    %cst_16 = arith.constant dense<0.000000e+00> : vector<4x256xf32>
    %41 = tpu.matmul %34, %40, %cst_16 {dimension_numbers = #tpu.dot_dimension_numbers<[1], [0], [0], [1], [0, 0, 1, 1], [], []>} : vector<4x4xf32>, vector<4x256xf32>, vector<4x256xf32> -> vector<4x256xf32>
    %42 = arith.addf %32, %41 : vector<4x256xf32>
    %c1 = arith.constant 1 : index
    %c0_17 = arith.constant 0 : index
    %c0_18 = arith.constant 0 : index
    %43 = vector.load %arg4[%c1, %c0_17, %c0_18] : memref<9x4x4xf32, #tpu.memory_space<vmem>>, vector<1x4x4xf32>
    %44 = vector.shape_cast %43 : vector<1x4x4xf32> to vector<4x4xf32>
    %c16_i32_19 = arith.constant 16 : i32
    %45 = tpu.dynamic_rotate %31 by %c16_i32_19 dim 1 : vector<4x256xf32>, i32 -> vector<4x256xf32>
    %cst_20 = arith.constant 0.000000e+00 : f32
    %46 = vector.shape_cast %20 : vector<1x256xi1> to vector<1x256xi1>
    %47 = vector.broadcast %46 : vector<1x256xi1> to vector<4x256xi1>
    %48 = vector.broadcast %cst_20 : f32 to vector<4x256xf32>
    %49 = arith.select %47, %45, %48 : vector<4x256xi1>, vector<4x256xf32>
    %cst_21 = arith.constant dense<0.000000e+00> : vector<4x256xf32>
    %50 = tpu.matmul %44, %49, %cst_21 {dimension_numbers = #tpu.dot_dimension_numbers<[1], [0], [0], [1], [0, 0, 1, 1], [], []>} : vector<4x4xf32>, vector<4x256xf32>, vector<4x256xf32> -> vector<4x256xf32>
    %51 = arith.addf %42, %50 : vector<4x256xf32>
    %c2 = arith.constant 2 : index
    %c0_22 = arith.constant 0 : index
    %c0_23 = arith.constant 0 : index
    %52 = vector.load %arg4[%c2, %c0_22, %c0_23] : memref<9x4x4xf32, #tpu.memory_space<vmem>>, vector<1x4x4xf32>
    %53 = vector.shape_cast %52 : vector<1x4x4xf32> to vector<4x4xf32>
    %c15_i32_24 = arith.constant 15 : i32
    %54 = tpu.dynamic_rotate %31 by %c15_i32_24 dim 1 : vector<4x256xf32>, i32 -> vector<4x256xf32>
    %55 = arith.andi %20, %26 : vector<1x256xi1>
    %cst_25 = arith.constant 0.000000e+00 : f32
    %56 = vector.shape_cast %55 : vector<1x256xi1> to vector<1x256xi1>
    %57 = vector.broadcast %56 : vector<1x256xi1> to vector<4x256xi1>
    %58 = vector.broadcast %cst_25 : f32 to vector<4x256xf32>
    %59 = arith.select %57, %54, %58 : vector<4x256xi1>, vector<4x256xf32>
    %cst_26 = arith.constant dense<0.000000e+00> : vector<4x256xf32>
    %60 = tpu.matmul %53, %59, %cst_26 {dimension_numbers = #tpu.dot_dimension_numbers<[1], [0], [0], [1], [0, 0, 1, 1], [], []>} : vector<4x4xf32>, vector<4x256xf32>, vector<4x256xf32> -> vector<4x256xf32>
    %61 = arith.addf %51, %60 : vector<4x256xf32>
    %c3 = arith.constant 3 : index
    %c0_27 = arith.constant 0 : index
    %c0_28 = arith.constant 0 : index
    %62 = vector.load %arg4[%c3, %c0_27, %c0_28] : memref<9x4x4xf32, #tpu.memory_space<vmem>>, vector<1x4x4xf32>
    %63 = vector.shape_cast %62 : vector<1x4x4xf32> to vector<4x4xf32>
    %c1_i32_29 = arith.constant 1 : i32
    %64 = tpu.dynamic_rotate %31 by %c1_i32_29 dim 1 : vector<4x256xf32>, i32 -> vector<4x256xf32>
    %cst_30 = arith.constant 0.000000e+00 : f32
    %65 = vector.shape_cast %24 : vector<1x256xi1> to vector<1x256xi1>
    %66 = vector.broadcast %65 : vector<1x256xi1> to vector<4x256xi1>
    %67 = vector.broadcast %cst_30 : f32 to vector<4x256xf32>
    %68 = arith.select %66, %64, %67 : vector<4x256xi1>, vector<4x256xf32>
    %cst_31 = arith.constant dense<0.000000e+00> : vector<4x256xf32>
    %69 = tpu.matmul %63, %68, %cst_31 {dimension_numbers = #tpu.dot_dimension_numbers<[1], [0], [0], [1], [0, 0, 1, 1], [], []>} : vector<4x4xf32>, vector<4x256xf32>, vector<4x256xf32> -> vector<4x256xf32>
    %70 = arith.addf %61, %69 : vector<4x256xf32>
    %c4 = arith.constant 4 : index
    %c0_32 = arith.constant 0 : index
    %c0_33 = arith.constant 0 : index
    %71 = vector.load %arg4[%c4, %c0_32, %c0_33] : memref<9x4x4xf32, #tpu.memory_space<vmem>>, vector<1x4x4xf32>
    %72 = vector.shape_cast %71 : vector<1x4x4xf32> to vector<4x4xf32>
    %cst_34 = arith.constant dense<0.000000e+00> : vector<4x256xf32>
    %73 = tpu.matmul %72, %31, %cst_34 {dimension_numbers = #tpu.dot_dimension_numbers<[1], [0], [0], [1], [0, 0, 1, 1], [], []>} : vector<4x4xf32>, vector<4x256xf32>, vector<4x256xf32> -> vector<4x256xf32>
    %74 = arith.addf %70, %73 : vector<4x256xf32>
    %c5 = arith.constant 5 : index
    %c0_35 = arith.constant 0 : index
    %c0_36 = arith.constant 0 : index
    %75 = vector.load %arg4[%c5, %c0_35, %c0_36] : memref<9x4x4xf32, #tpu.memory_space<vmem>>, vector<1x4x4xf32>
    %76 = vector.shape_cast %75 : vector<1x4x4xf32> to vector<4x4xf32>
    %c255_i32 = arith.constant 255 : i32
    %77 = tpu.dynamic_rotate %31 by %c255_i32 dim 1 : vector<4x256xf32>, i32 -> vector<4x256xf32>
    %cst_37 = arith.constant 0.000000e+00 : f32
    %78 = vector.shape_cast %26 : vector<1x256xi1> to vector<1x256xi1>
    %79 = vector.broadcast %78 : vector<1x256xi1> to vector<4x256xi1>
    %80 = vector.broadcast %cst_37 : f32 to vector<4x256xf32>
    %81 = arith.select %79, %77, %80 : vector<4x256xi1>, vector<4x256xf32>
    %cst_38 = arith.constant dense<0.000000e+00> : vector<4x256xf32>
    %82 = tpu.matmul %76, %81, %cst_38 {dimension_numbers = #tpu.dot_dimension_numbers<[1], [0], [0], [1], [0, 0, 1, 1], [], []>} : vector<4x4xf32>, vector<4x256xf32>, vector<4x256xf32> -> vector<4x256xf32>
    %83 = arith.addf %74, %82 : vector<4x256xf32>
    %c6 = arith.constant 6 : index
    %c0_39 = arith.constant 0 : index
    %c0_40 = arith.constant 0 : index
    %84 = vector.load %arg4[%c6, %c0_39, %c0_40] : memref<9x4x4xf32, #tpu.memory_space<vmem>>, vector<1x4x4xf32>
    %85 = vector.shape_cast %84 : vector<1x4x4xf32> to vector<4x4xf32>
    %c241_i32 = arith.constant 241 : i32
    %86 = tpu.dynamic_rotate %31 by %c241_i32 dim 1 : vector<4x256xf32>, i32 -> vector<4x256xf32>
    %87 = arith.andi %22, %24 : vector<1x256xi1>
    %cst_41 = arith.constant 0.000000e+00 : f32
    %88 = vector.shape_cast %87 : vector<1x256xi1> to vector<1x256xi1>
    %89 = vector.broadcast %88 : vector<1x256xi1> to vector<4x256xi1>
    %90 = vector.broadcast %cst_41 : f32 to vector<4x256xf32>
    %91 = arith.select %89, %86, %90 : vector<4x256xi1>, vector<4x256xf32>
    %cst_42 = arith.constant dense<0.000000e+00> : vector<4x256xf32>
    %92 = tpu.matmul %85, %91, %cst_42 {dimension_numbers = #tpu.dot_dimension_numbers<[1], [0], [0], [1], [0, 0, 1, 1], [], []>} : vector<4x4xf32>, vector<4x256xf32>, vector<4x256xf32> -> vector<4x256xf32>
    %93 = arith.addf %83, %92 : vector<4x256xf32>
    %c7 = arith.constant 7 : index
    %c0_43 = arith.constant 0 : index
    %c0_44 = arith.constant 0 : index
    %94 = vector.load %arg4[%c7, %c0_43, %c0_44] : memref<9x4x4xf32, #tpu.memory_space<vmem>>, vector<1x4x4xf32>
    %95 = vector.shape_cast %94 : vector<1x4x4xf32> to vector<4x4xf32>
    %c240_i32_45 = arith.constant 240 : i32
    %96 = tpu.dynamic_rotate %31 by %c240_i32_45 dim 1 : vector<4x256xf32>, i32 -> vector<4x256xf32>
    %cst_46 = arith.constant 0.000000e+00 : f32
    %97 = vector.shape_cast %22 : vector<1x256xi1> to vector<1x256xi1>
    %98 = vector.broadcast %97 : vector<1x256xi1> to vector<4x256xi1>
    %99 = vector.broadcast %cst_46 : f32 to vector<4x256xf32>
    %100 = arith.select %98, %96, %99 : vector<4x256xi1>, vector<4x256xf32>
    %cst_47 = arith.constant dense<0.000000e+00> : vector<4x256xf32>
    %101 = tpu.matmul %95, %100, %cst_47 {dimension_numbers = #tpu.dot_dimension_numbers<[1], [0], [0], [1], [0, 0, 1, 1], [], []>} : vector<4x4xf32>, vector<4x256xf32>, vector<4x256xf32> -> vector<4x256xf32>
    %102 = arith.addf %93, %101 : vector<4x256xf32>
    %c8 = arith.constant 8 : index
    %c0_48 = arith.constant 0 : index
    %c0_49 = arith.constant 0 : index
    %103 = vector.load %arg4[%c8, %c0_48, %c0_49] : memref<9x4x4xf32, #tpu.memory_space<vmem>>, vector<1x4x4xf32>
    %104 = vector.shape_cast %103 : vector<1x4x4xf32> to vector<4x4xf32>
    %c239_i32 = arith.constant 239 : i32
    %105 = tpu.dynamic_rotate %31 by %c239_i32 dim 1 : vector<4x256xf32>, i32 -> vector<4x256xf32>
    %106 = arith.andi %22, %26 : vector<1x256xi1>
    %cst_50 = arith.constant 0.000000e+00 : f32
    %107 = vector.shape_cast %106 : vector<1x256xi1> to vector<1x256xi1>
    %108 = vector.broadcast %107 : vector<1x256xi1> to vector<4x256xi1>
    %109 = vector.broadcast %cst_50 : f32 to vector<4x256xf32>
    %110 = arith.select %108, %105, %109 : vector<4x256xi1>, vector<4x256xf32>
    %cst_51 = arith.constant dense<0.000000e+00> : vector<4x256xf32>
    %111 = tpu.matmul %104, %110, %cst_51 {dimension_numbers = #tpu.dot_dimension_numbers<[1], [0], [0], [1], [0, 0, 1, 1], [], []>} : vector<4x4xf32>, vector<4x256xf32>, vector<4x256xf32> -> vector<4x256xf32>
    %112 = arith.addf %102, %111 : vector<4x256xf32>
    %c0_52 = arith.constant 0 : index
    %c0_53 = arith.constant 0 : index
    %113 = vector.load %arg5[%c0_52, %c0_53] : memref<4x1xf32, #tpu.memory_space<vmem>>, vector<4x1xf32>
    %114 = vector.broadcast %113 : vector<4x1xf32> to vector<4x256xf32>
    %115 = arith.addf %112, %114 : vector<4x256xf32>
    %c0_54 = arith.constant 0 : index
    %c0_55 = arith.constant 0 : index
    %116 = vector.load %arg6[%c0_54, %c0_55] : memref<4x3xf32, #tpu.memory_space<vmem>>, vector<4x1xf32>
    %c0_56 = arith.constant 0 : index
    %c1_57 = arith.constant 1 : index
    %117 = vector.load %arg6[%c0_56, %c1_57] : memref<4x3xf32, #tpu.memory_space<vmem>>, vector<4x1xf32>
    %c0_58 = arith.constant 0 : index
    %c2_59 = arith.constant 2 : index
    %118 = vector.load %arg6[%c0_58, %c2_59] : memref<4x3xf32, #tpu.memory_space<vmem>>, vector<4x1xf32>
    %c16_i32_60 = arith.constant 16 : i32
    %119 = tpu.dynamic_rotate %115 by %c16_i32_60 dim 1 : vector<4x256xf32>, i32 -> vector<4x256xf32>
    %cst_61 = arith.constant 0.000000e+00 : f32
    %120 = vector.shape_cast %20 : vector<1x256xi1> to vector<1x256xi1>
    %121 = vector.broadcast %120 : vector<1x256xi1> to vector<4x256xi1>
    %122 = vector.broadcast %cst_61 : f32 to vector<4x256xf32>
    %123 = arith.select %121, %119, %122 : vector<4x256xi1>, vector<4x256xf32>
    %c240_i32_62 = arith.constant 240 : i32
    %124 = tpu.dynamic_rotate %115 by %c240_i32_62 dim 1 : vector<4x256xf32>, i32 -> vector<4x256xf32>
    %cst_63 = arith.constant 0.000000e+00 : f32
    %125 = vector.shape_cast %22 : vector<1x256xi1> to vector<1x256xi1>
    %126 = vector.broadcast %125 : vector<1x256xi1> to vector<4x256xi1>
    %127 = vector.broadcast %cst_63 : f32 to vector<4x256xf32>
    %128 = arith.select %126, %124, %127 : vector<4x256xi1>, vector<4x256xf32>
    %129 = vector.broadcast %116 : vector<4x1xf32> to vector<4x256xf32>
    %130 = arith.mulf %123, %129 : vector<4x256xf32>
    %131 = vector.broadcast %117 : vector<4x1xf32> to vector<4x256xf32>
    %132 = arith.mulf %115, %131 : vector<4x256xf32>
    %133 = arith.addf %130, %132 : vector<4x256xf32>
    %134 = vector.broadcast %118 : vector<4x1xf32> to vector<4x256xf32>
    %135 = arith.mulf %128, %134 : vector<4x256xf32>
    %136 = arith.addf %133, %135 : vector<4x256xf32>
    %c0_64 = arith.constant 0 : index
    %c0_65 = arith.constant 0 : index
    %137 = vector.load %arg7[%c0_64, %c0_65] : memref<4x1xf32, #tpu.memory_space<vmem>>, vector<4x1xf32>
    %138 = vector.broadcast %137 : vector<4x1xf32> to vector<4x256xf32>
    %139 = arith.addf %136, %138 : vector<4x256xf32>
    %c0_66 = arith.constant 0 : index
    %c0_67 = arith.constant 0 : index
    %140 = vector.load %arg8[%c0_66, %c0_67] : memref<4x3xf32, #tpu.memory_space<vmem>>, vector<4x1xf32>
    %c0_68 = arith.constant 0 : index
    %c1_69 = arith.constant 1 : index
    %141 = vector.load %arg8[%c0_68, %c1_69] : memref<4x3xf32, #tpu.memory_space<vmem>>, vector<4x1xf32>
    %c0_70 = arith.constant 0 : index
    %c2_71 = arith.constant 2 : index
    %142 = vector.load %arg8[%c0_70, %c2_71] : memref<4x3xf32, #tpu.memory_space<vmem>>, vector<4x1xf32>
    %c1_i32_72 = arith.constant 1 : i32
    %143 = tpu.dynamic_rotate %139 by %c1_i32_72 dim 1 : vector<4x256xf32>, i32 -> vector<4x256xf32>
    %cst_73 = arith.constant 0.000000e+00 : f32
    %144 = vector.shape_cast %24 : vector<1x256xi1> to vector<1x256xi1>
    %145 = vector.broadcast %144 : vector<1x256xi1> to vector<4x256xi1>
    %146 = vector.broadcast %cst_73 : f32 to vector<4x256xf32>
    %147 = arith.select %145, %143, %146 : vector<4x256xi1>, vector<4x256xf32>
    %c255_i32_74 = arith.constant 255 : i32
    %148 = tpu.dynamic_rotate %139 by %c255_i32_74 dim 1 : vector<4x256xf32>, i32 -> vector<4x256xf32>
    %cst_75 = arith.constant 0.000000e+00 : f32
    %149 = vector.shape_cast %26 : vector<1x256xi1> to vector<1x256xi1>
    %150 = vector.broadcast %149 : vector<1x256xi1> to vector<4x256xi1>
    %151 = vector.broadcast %cst_75 : f32 to vector<4x256xf32>
    %152 = arith.select %150, %148, %151 : vector<4x256xi1>, vector<4x256xf32>
    %153 = vector.broadcast %140 : vector<4x1xf32> to vector<4x256xf32>
    %154 = arith.mulf %147, %153 : vector<4x256xf32>
    %155 = vector.broadcast %141 : vector<4x1xf32> to vector<4x256xf32>
    %156 = arith.mulf %139, %155 : vector<4x256xf32>
    %157 = arith.addf %154, %156 : vector<4x256xf32>
    %158 = vector.broadcast %142 : vector<4x1xf32> to vector<4x256xf32>
    %159 = arith.mulf %152, %158 : vector<4x256xf32>
    %160 = arith.addf %157, %159 : vector<4x256xf32>
    %c0_76 = arith.constant 0 : index
    %c0_77 = arith.constant 0 : index
    %161 = vector.load %arg9[%c0_76, %c0_77] : memref<4x1xf32, #tpu.memory_space<vmem>>, vector<4x1xf32>
    %162 = vector.broadcast %161 : vector<4x1xf32> to vector<4x256xf32>
    %163 = arith.addf %160, %162 : vector<4x256xf32>
    %164 = arith.addf %31, %163 : vector<4x256xf32>
    %c0_78 = arith.constant 0 : index
    %c0_79 = arith.constant 0 : index
    %c0_80 = arith.constant 0 : index
    %165 = vector.load %arg10[%c0_78, %c0_79, %c0_80] : memref<1x4x256xf32, #tpu.memory_space<vmem>>, vector<1x4x256xf32>
    %166 = vector.shape_cast %165 : vector<1x4x256xf32> to vector<4x256xf32>
    %167 = vector.shape_cast %164 : vector<4x256xf32> to vector<1x4x256xf32>
    tpu.vector_store %arg10[%c0_78, %c0_79, %c0_80], %167 {strides = array<i32>} : memref<1x4x256xf32, #tpu.memory_space<vmem>>, vector<1x4x256xf32>,
    return
  }
  func.func @transform_0(%arg0: i32) -> (i32, i32, i32) {
    %c0_i32 = arith.constant 0 : i32
    %c0_i32_0 = arith.constant 0 : i32
    %c0_i32_1 = arith.constant 0 : i32
    return %arg0, %c0_i32, %c0_i32_0 : i32, i32, i32
  }
  func.func @transform_1(%arg0: i32) -> (i32, i32) {
    %c0_i32 = arith.constant 0 : i32
    %c0_i32_0 = arith.constant 0 : i32
    %c0_i32_1 = arith.constant 0 : i32
    return %c0_i32, %c0_i32_0 : i32, i32
  }
  func.func @transform_2(%arg0: i32) -> (i32, i32) {
    %c0_i32 = arith.constant 0 : i32
    %c0_i32_0 = arith.constant 0 : i32
    %c0_i32_1 = arith.constant 0 : i32
    return %c0_i32, %c0_i32_0 : i32, i32
  }
  func.func @transform_3(%arg0: i32) -> (i32, i32, i32) {
    %c0_i32 = arith.constant 0 : i32
    %c0_i32_0 = arith.constant 0 : i32
    %c0_i32_1 = arith.constant 0 : i32
    %c0_i32_2 = arith.constant 0 : i32
    return %c0_i32, %c0_i32_0, %c0_i32_1 : i32, i32, i32
  }
  func.func @transform_4(%arg0: i32) -> (i32, i32) {
    %c0_i32 = arith.constant 0 : i32
    %c0_i32_0 = arith.constant 0 : i32
    %c0_i32_1 = arith.constant 0 : i32
    return %c0_i32, %c0_i32_0 : i32, i32
  }
  func.func @transform_5(%arg0: i32) -> (i32, i32) {
    %c0_i32 = arith.constant 0 : i32
    %c0_i32_0 = arith.constant 0 : i32
    %c0_i32_1 = arith.constant 0 : i32
    return %c0_i32, %c0_i32_0 : i32, i32
  }
  func.func @transform_6(%arg0: i32) -> (i32, i32) {
    %c0_i32 = arith.constant 0 : i32
    %c0_i32_0 = arith.constant 0 : i32
    %c0_i32_1 = arith.constant 0 : i32
    return %c0_i32, %c0_i32_0 : i32, i32
  }
  func.func @transform_7(%arg0: i32) -> (i32, i32) {
    %c0_i32 = arith.constant 0 : i32
    %c0_i32_0 = arith.constant 0 : i32
    %c0_i32_1 = arith.constant 0 : i32
    return %c0_i32, %c0_i32_0 : i32, i32
  }
  func.func @transform_8(%arg0: i32) -> (i32, i32) {
    %c0_i32 = arith.constant 0 : i32
    %c0_i32_0 = arith.constant 0 : i32
    %c0_i32_1 = arith.constant 0 : i32
    return %c0_i32, %c0_i32_0 : i32, i32
  }
  func.func @transform_9(%arg0: i32) -> (i32, i32, i32) {
    %c0_i32 = arith.constant 0 : i32
    %c0_i32_0 = arith.constant 0 : i32
    %c0_i32_1 = arith.constant 0 : i32
    return %arg0, %c0_i32, %c0_i32_0 : i32, i32, i32
  }
}

</mosaic_0001>

<llo_original>
// kernel: tpu_custom_call.1
$region0: #{tpu_custom_call.1}
  #allocation0 [shape = 'u32[]', space=smem, size = 0x4, offset = 0x4, fixed_abs, tag = 'smem constant byte address 0x4 - core index']
  #allocation1 [shape = 'u32[144,128]{1,0:T(1,128)}', space=vmem, size = 0x12000, scoped, tag = 'internal scratch']
  %s0 = inlined_call_operand.vmem [shape: f32[2,4,256], index: 0, kind: input, shape index: {}]
  %s1 = inlined_call_operand.vmem [shape: f32[4,4], index: 1, kind: input, shape index: {}]
  %s2 = inlined_call_operand.vmem [shape: f32[4,1], index: 2, kind: input, shape index: {}]
  %s3 = inlined_call_operand.vmem [shape: f32[9,4,4], index: 3, kind: input, shape index: {}]
  %s4 = inlined_call_operand.vmem [shape: f32[4,1], index: 4, kind: input, shape index: {}]
  %s5 = inlined_call_operand.vmem [shape: f32[4,3], index: 5, kind: input, shape index: {}]
  %s6 = inlined_call_operand.vmem [shape: f32[4,1], index: 6, kind: input, shape index: {}]
  %s7 = inlined_call_operand.vmem [shape: f32[4,3], index: 7, kind: input, shape index: {}]
  %s8 = inlined_call_operand.vmem [shape: f32[4,1], index: 8, kind: input, shape index: {}]
  %s9 = inlined_call_operand.hbm [shape: f32[2,4,256], index: 9, kind: output, shape index: {}]
  %s10 = sld [smem:[#allocation0]]
  $region69: #{tpu_custom_call.1} parent=0
    _
  %s12 = ssub.s32 1, %s10
  %s13 = scalar_select 0, %s12, %s10
  $region1: #{tpu_custom_call.1} parent=0
    #allocation2 [shape = 'u8[8192]{0}', space=vmem, size = 0x2000, scoped, tag = 'output window, operand 0']
    #allocation3 [shape = 's32[2]{0}', space=sflag, size = 0x8, scoped, tag = 'scoped memory for tpu_custom_call.1']
    %14 = vsyncpa [#allocation3], 0
    %s15 = scalar_lea.sflag [#allocation3], 1
    %16 = vsyncpa %s15, 0
    loop: start=0, step=1, limit=4
    $region2: #{tpu_custom_call.1} parent=1 // loop_pre_header
      _
    $region3: #{tpu_custom_call.1} parent=1 // loop_header
      %s18 = sphi 0, %s22
      %p19 = scmp.ge.s32.totalorder %s18, 4
      %s28 = sphi 0, %s30
      %s31 = sphi 0, %s28
      %s32 = sphi 0, %s31
      %s48 = sphi 0, %s32
      %s52 = sphi 0, %s52
      %s54 = sphi 0, %s52
      %s55 = sphi 0, %s54
      %s69 = sphi 0, %s55
      %s73 = sphi 0, %s73
      %s75 = sphi 0, %s73
      %s76 = sphi 0, %s75
      %s90 = sphi 0, %s76
      %s94 = sphi 0, %s94
      %s96 = sphi 0, %s94
      %s97 = sphi 0, %s96
      %s111 = sphi 0, %s97
      %s115 = sphi 0, %s115
      %s117 = sphi 0, %s115
      %s118 = sphi 0, %s117
      %s132 = sphi 0, %s118
      %s136 = sphi 0, %s136
      %s138 = sphi 0, %s136
      %s139 = sphi 0, %s138
      %s153 = sphi 0, %s139
      %s157 = sphi 0, %s157
      %s159 = sphi 0, %s157
      %s160 = sphi 0, %s159
      %s174 = sphi 0, %s160
      %s178 = sphi 0, %s178
      %s180 = sphi 0, %s178
      %s181 = sphi 0, %s180
      %s195 = sphi 0, %s181
      %s199 = sphi 0, %s199
      %s201 = sphi 0, %s199
      %s202 = sphi 0, %s201
      %s216 = sphi 0, %s202
      %s222 = sphi 0, %s224
      %s225 = sphi 0, %s222
      %s226 = sphi 0, %s225
      %s242 = sphi 0, %s226
    $region4: #{tpu_custom_call.1} parent=1 // loop_header_branch
      %21 = sbr.rel (%p19) target = $region8
    $region5: #{tpu_custom_call.1} parent=1 // loop_body
      %s23 = ssub.s32 %s18, 1
      %s24 = ssub.s32 %s18, 2
      %s25 = sadd.s32 %s18, 1
      %s26 = ssub.s32 %s18, %s25
      %p27 = scmp.eq.s32.totalorder %s26, 0
      %s29 = sadd.s32 %s28, 1
      %s30 = scalar_select %p27, %s28, %s29
      %p33 = pneg %p27
      %p34 = scmp.eq.s32.totalorder %s18, 1
      %p35 = por %p33, %p34
      %p36 = scmp.ne.s32.totalorder %s28, %s31
      %p37 = scmp.eq.s32.totalorder %s18, 0
      %p38 = por %p36, %p37
      %p39 = scmp.ne.s32.totalorder %s28, %s31
      %p40 = scmp.eq.s32.totalorder %s23, 1
      %p41 = por %p39, %p40
      %p42 = scmp.ne.s32.totalorder %s31, %s32
      %p43 = scmp.eq.s32.totalorder %s23, 0
      %p44 = por %p42, %p43
      %p45 = scmp.ne.s32.totalorder %s31, %s32
      %p46 = scmp.eq.s32.totalorder %s24, 1
      %p47 = por %p45, %p46
      %p49 = scmp.ne.s32.totalorder %s32, %s48
      %p50 = scmp.eq.s32.totalorder %s24, 0
      %p51 = por %p49, %p50
      %s53 = sadd.s32 %s52, 1
      %p56 = scmp.eq.s32.totalorder %s18, 1
      %p57 = scmp.ne.s32.totalorder %s52, %s54
      %p58 = scmp.eq.s32.totalorder %s18, 0
      %p59 = por %p57, %p58
      %p60 = scmp.ne.s32.totalorder %s52, %s54
      %p61 = scmp.eq.s32.totalorder %s23, 1
      %p62 = por %p60, %p61
      %p63 = scmp.ne.s32.totalorder %s54, %s55
      %p64 = scmp.eq.s32.totalorder %s23, 0
      %p65 = por %p63, %p64
      %p66 = scmp.ne.s32.totalorder %s54, %s55
      %p67 = scmp.eq.s32.totalorder %s24, 1
      %p68 = por %p66, %p67
      %p70 = scmp.ne.s32.totalorder %s55, %s69
      %p71 = scmp.eq.s32.totalorder %s24, 0
      %p72 = por %p70, %p71
      %s74 = sadd.s32 %s73, 1
      %p77 = scmp.eq.s32.totalorder %s18, 1
      %p78 = scmp.ne.s32.totalorder %s73, %s75
      %p79 = scmp.eq.s32.totalorder %s18, 0
      %p80 = por %p78, %p79
      %p81 = scmp.ne.s32.totalorder %s73, %s75
      %p82 = scmp.eq.s32.totalorder %s23, 1
      %p83 = por %p81, %p82
      %p84 = scmp.ne.s32.totalorder %s75, %s76
      %p85 = scmp.eq.s32.totalorder %s23, 0
      %p86 = por %p84, %p85
      %p87 = scmp.ne.s32.totalorder %s75, %s76
      %p88 = scmp.eq.s32.totalorder %s24, 1
      %p89 = por %p87, %p88
      %p91 = scmp.ne.s32.totalorder %s76, %s90
      %p92 = scmp.eq.s32.totalorder %s24, 0
      %p93 = por %p91, %p92
      %s95 = sadd.s32 %s94, 1
      %p98 = scmp.eq.s32.totalorder %s18, 1
      %p99 = scmp.ne.s32.totalorder %s94, %s96
      %p100 = scmp.eq.s32.totalorder %s18, 0
      %p101 = por %p99, %p100
      %p102 = scmp.ne.s32.totalorder %s94, %s96
      %p103 = scmp.eq.s32.totalorder %s23, 1
      %p104 = por %p102, %p103
      %p105 = scmp.ne.s32.totalorder %s96, %s97
      %p106 = scmp.eq.s32.totalorder %s23, 0
      %p107 = por %p105, %p106
      %p108 = scmp.ne.s32.totalorder %s96, %s97
      %p109 = scmp.eq.s32.totalorder %s24, 1
      %p110 = por %p108, %p109
      %p112 = scmp.ne.s32.totalorder %s97, %s111
      %p113 = scmp.eq.s32.totalorder %s24, 0
      %p114 = por %p112, %p113
      %s116 = sadd.s32 %s115, 1
      %p119 = scmp.eq.s32.totalorder %s18, 1
      %p120 = scmp.ne.s32.totalorder %s115, %s117
      %p121 = scmp.eq.s32.totalorder %s18, 0
      %p122 = por %p120, %p121
      %p123 = scmp.ne.s32.totalorder %s115, %s117
      %p124 = scmp.eq.s32.totalorder %s23, 1
      %p125 = por %p123, %p124
      %p126 = scmp.ne.s32.totalorder %s117, %s118
      %p127 = scmp.eq.s32.totalorder %s23, 0
      %p128 = por %p126, %p127
      %p129 = scmp.ne.s32.totalorder %s117, %s118
      %p130 = scmp.eq.s32.totalorder %s24, 1
      %p131 = por %p129, %p130
      %p133 = scmp.ne.s32.totalorder %s118, %s132
      %p134 = scmp.eq.s32.totalorder %s24, 0
      %p135 = por %p133, %p134
      %s137 = sadd.s32 %s136, 1
      %p140 = scmp.eq.s32.totalorder %s18, 1
      %p141 = scmp.ne.s32.totalorder %s136, %s138
      %p142 = scmp.eq.s32.totalorder %s18, 0
      %p143 = por %p141, %p142
      %p144 = scmp.ne.s32.totalorder %s136, %s138
      %p145 = scmp.eq.s32.totalorder %s23, 1
      %p146 = por %p144, %p145
      %p147 = scmp.ne.s32.totalorder %s138, %s139
      %p148 = scmp.eq.s32.totalorder %s23, 0
      %p149 = por %p147, %p148
      %p150 = scmp.ne.s32.totalorder %s138, %s139
      %p151 = scmp.eq.s32.totalorder %s24, 1
      %p152 = por %p150, %p151
      %p154 = scmp.ne.s32.totalorder %s139, %s153
      %p155 = scmp.eq.s32.totalorder %s24, 0
      %p156 = por %p154, %p155
      %s158 = sadd.s32 %s157, 1
      %p161 = scmp.eq.s32.totalorder %s18, 1
      %p162 = scmp.ne.s32.totalorder %s157, %s159
      %p163 = scmp.eq.s32.totalorder %s18, 0
      %p164 = por %p162, %p163
      %p165 = scmp.ne.s32.totalorder %s157, %s159
      %p166 = scmp.eq.s32.totalorder %s23, 1
      %p167 = por %p165, %p166
      %p168 = scmp.ne.s32.totalorder %s159, %s160
      %p169 = scmp.eq.s32.totalorder %s23, 0
      %p170 = por %p168, %p169
      %p171 = scmp.ne.s32.totalorder %s159, %s160
      %p172 = scmp.eq.s32.totalorder %s24, 1
      %p173 = por %p171, %p172
      %p175 = scmp.ne.s32.totalorder %s160, %s174
      %p176 = scmp.eq.s32.totalorder %s24, 0
      %p177 = por %p175, %p176
      %s179 = sadd.s32 %s178, 1
      %p182 = scmp.eq.s32.totalorder %s18, 1
      %p183 = scmp.ne.s32.totalorder %s178, %s180
      %p184 = scmp.eq.s32.totalorder %s18, 0
      %p185 = por %p183, %p184
      %p186 = scmp.ne.s32.totalorder %s178, %s180
      %p187 = scmp.eq.s32.totalorder %s23, 1
      %p188 = por %p186, %p187
      %p189 = scmp.ne.s32.totalorder %s180, %s181
      %p190 = scmp.eq.s32.totalorder %s23, 0
      %p191 = por %p189, %p190
      %p192 = scmp.ne.s32.totalorder %s180, %s181
      %p193 = scmp.eq.s32.totalorder %s24, 1
      %p194 = por %p192, %p193
      %p196 = scmp.ne.s32.totalorder %s181, %s195
      %p197 = scmp.eq.s32.totalorder %s24, 0
      %p198 = por %p196, %p197
      %s200 = sadd.s32 %s199, 1
      %p203 = scmp.eq.s32.totalorder %s18, 1
      %p204 = scmp.ne.s32.totalorder %s199, %s201
      %p205 = scmp.eq.s32.totalorder %s18, 0
      %p206 = por %p204, %p205
      %p207 = scmp.ne.s32.totalorder %s199, %s201
      %p208 = scmp.eq.s32.totalorder %s23, 1
      %p209 = por %p207, %p208
      %p210 = scmp.ne.s32.totalorder %s201, %s202
      %p211 = scmp.eq.s32.totalorder %s23, 0
      %p212 = por %p210, %p211
      %p213 = scmp.ne.s32.totalorder %s201, %s202
      %p214 = scmp.eq.s32.totalorder %s24, 1
      %p215 = por %p213, %p214
      %p217 = scmp.ne.s32.totalorder %s202, %s216
      %p218 = scmp.eq.s32.totalorder %s24, 0
      %p219 = por %p217, %p218
      %s220 = ssub.s32 %s18, %s25
      %p221 = scmp.eq.s32.totalorder %s220, 0
      %s223 = sadd.s32 %s222, 1
      %s224 = scalar_select %p221, %s222, %s223
      %p227 = pneg %p221
      %p228 = scmp.eq.s32.totalorder %s18, 1
      %p229 = por %p227, %p228
      %p230 = scmp.ne.s32.totalorder %s222, %s225
      %p231 = scmp.eq.s32.totalorder %s18, 0
      %p232 = por %p230, %p231
      %p233 = scmp.ne.s32.totalorder %s222, %s225
      %p234 = scmp.eq.s32.totalorder %s23, 1
      %p235 = por %p233, %p234
      %p236 = scmp.ne.s32.totalorder %s225, %s226
      %p237 = scmp.eq.s32.totalorder %s23, 0
      %p238 = por %p236, %p237
      %p239 = scmp.ne.s32.totalorder %s225, %s226
      %p240 = scmp.eq.s32.totalorder %s24, 1
      %p241 = por %p239, %p240
      %p243 = scmp.ne.s32.totalorder %s226, %s242
      %p244 = scmp.eq.s32.totalorder %s24, 0
      %p245 = por %p243, %p244
      %p246 = scmp.le.s32.totalorder 1, %s18
      %p247 = scmp.lt.s32.totalorder %s18, 3
      %p248 = pnand %p246, %p247
      %p249 = pneg %p248
      // Predicated region
      $region9: #{tpu_custom_call.1} parent=5 // pred_check
        _
      $region10: #{tpu_custom_call.1} parent=5 // pred_check_branch
        %251 = sbr.rel (%p248) target = $region12
      $region11: #{tpu_custom_call.1} parent=5 // pred_region
        %s252 = ssub.s32 %s18, 1
        // Predicated region
        $region13: #{tpu_custom_call.1} parent=11 // pred_check
          %p253 = pneg %p65
        $region14: #{tpu_custom_call.1} parent=11 // pred_check_branch
          %255 = sbr.rel (%p253) target = $region16
        $region15: #{tpu_custom_call.1} parent=11 // pred_region
          _
        $region16: #{tpu_custom_call.1} parent=11 // pred_fallthru
          _
        // Predicated region
        $region17: #{tpu_custom_call.1} parent=11 // pred_check
          %p256 = pneg %p86
        $region18: #{tpu_custom_call.1} parent=11 // pred_check_branch
          %258 = sbr.rel (%p256) target = $region20
        $region19: #{tpu_custom_call.1} parent=11 // pred_region
          _
        $region20: #{tpu_custom_call.1} parent=11 // pred_fallthru
          _
        // Predicated region
        $region21: #{tpu_custom_call.1} parent=11 // pred_check
          %p259 = pneg %p107
        $region22: #{tpu_custom_call.1} parent=11 // pred_check_branch
          %261 = sbr.rel (%p259) target = $region24
        $region23: #{tpu_custom_call.1} parent=11 // pred_region
          _
        $region24: #{tpu_custom_call.1} parent=11 // pred_fallthru
          _
        // Predicated region
        $region25: #{tpu_custom_call.1} parent=11 // pred_check
          %p262 = pneg %p128
        $region26: #{tpu_custom_call.1} parent=11 // pred_check_branch
          %264 = sbr.rel (%p262) target = $region28
        $region27: #{tpu_custom_call.1} parent=11 // pred_region
          _
        $region28: #{tpu_custom_call.1} parent=11 // pred_fallthru
          _
        // Predicated region
        $region29: #{tpu_custom_call.1} parent=11 // pred_check
          %p265 = pneg %p149
        $region30: #{tpu_custom_call.1} parent=11 // pred_check_branch
          %267 = sbr.rel (%p265) target = $region32
        $region31: #{tpu_custom_call.1} parent=11 // pred_region
          _
        $region32: #{tpu_custom_call.1} parent=11 // pred_fallthru
          _
        // Predicated region
        $region33: #{tpu_custom_call.1} parent=11 // pred_check
          %p268 = pneg %p170
        $region34: #{tpu_custom_call.1} parent=11 // pred_check_branch
          %270 = sbr.rel (%p268) target = $region36
        $region35: #{tpu_custom_call.1} parent=11 // pred_region
          _
        $region36: #{tpu_custom_call.1} parent=11 // pred_fallthru
          _
        // Predicated region
        $region37: #{tpu_custom_call.1} parent=11 // pred_check
          %p271 = pneg %p191
        $region38: #{tpu_custom_call.1} parent=11 // pred_check_branch
          %273 = sbr.rel (%p271) target = $region40
        $region39: #{tpu_custom_call.1} parent=11 // pred_region
          _
        $region40: #{tpu_custom_call.1} parent=11 // pred_fallthru
          _
        // Predicated region
        $region41: #{tpu_custom_call.1} parent=11 // pred_check
          %p274 = pneg %p212
        $region42: #{tpu_custom_call.1} parent=11 // pred_check_branch
          %276 = sbr.rel (%p274) target = $region44
        $region43: #{tpu_custom_call.1} parent=11 // pred_region
          _
        $region44: #{tpu_custom_call.1} parent=11 // pred_fallthru
          _
      $region12: #{tpu_custom_call.1} parent=5 // pred_fallthru
        _
      %p277 = scmp.lt.s32.totalorder %s18, 2
      // Predicated region
      $region45: #{tpu_custom_call.1} parent=5 // pred_check
        %p278 = pneg %p277
      $region46: #{tpu_custom_call.1} parent=5 // pred_check_branch
        %280 = sbr.rel (%p278) target = $region48
      $region47: #{tpu_custom_call.1} parent=5 // pred_region
        // Predicated region
        $region49: #{tpu_custom_call.1} parent=47 // pred_check
          %p281 = pneg %p38
        $region50: #{tpu_custom_call.1} parent=47 // pred_check_branch
          %283 = sbr.rel (%p281) target = $region52
        $region51: #{tpu_custom_call.1} parent=47 // pred_region
          %p284 = scmp.lt.s32.totalorder %s18, 1
          %s285 = scalar_select %p284, %s18, 1
          %s286 = smul.addr %s285, 2
          %s287 = smul.addr %s286, 4
          %s288 = scalar_lea.vmem %s0, %s287
        $region52: #{tpu_custom_call.1} parent=47 // pred_fallthru
          _
      $region48: #{tpu_custom_call.1} parent=5 // pred_fallthru
        _
      %p289 = scmp.le.s32.totalorder 1, %s18
      %p290 = scmp.lt.s32.totalorder %s18, 3
      %p291 = pnand %p289, %p290
      %p292 = pneg %p291
      // Predicated region
      $region53: #{tpu_custom_call.1} parent=5 // pred_check
        _
      $region54: #{tpu_custom_call.1} parent=5 // pred_check_branch
        %294 = sbr.rel (%p291) target = $region56
      $region55: #{tpu_custom_call.1} parent=5 // pred_region
        %s295 = ssub.s32 %s18, 1
        %p296 = scmp.lt.s32.totalorder %s23, 1
        %s297 = scalar_select %p296, %s23, 1
        %s298 = smul.addr %s297, 2
        %s299 = smul.addr %s298, 4
        %s300 = scalar_lea.vmem %s0, %s299
        %p301 = pneg %p44
        %p302 = pneg %p41
        %p303 = pneg %p65
        %p304 = pneg %p62
        %p305 = pneg %p86
        %p306 = pneg %p83
        %p307 = pneg %p107
        %p308 = pneg %p104
        %p309 = pneg %p128
        %p310 = pneg %p125
        %p311 = pneg %p149
        %p312 = pneg %p146
        %p313 = pneg %p170
        %p314 = pneg %p167
        %p315 = pneg %p191
        %p316 = pneg %p188
        %p317 = pneg %p212
        %p318 = pneg %p209
        %p319 = pneg %p238
        %p320 = pneg %p235
        %s321 = sand.u32 %s225, 1
        %s322 = scalar_lea.sflag [#allocation3], %s321
        %s323 = sand.u32 %s225, 1
        %s324 = smul.addr %s323, 8
        %s325 = scalar_lea.vmem [#allocation2], %s324
        %p326 = scmp.lt.s32.totalorder %s23, 1
        %s327 = scalar_select %p326, %s23, 1
        %s328 = smul.addr %s327, 2
        %s329 = smul.addr %s328, 4
        %s330 = scalar_lea.vmem %s0, %s329
        %v331 = vld [vmem:[%s330] sm:$0xff]
        %v332 = vlaneseq
        %v333 = vand.u32 %v332, 127
        %v334 = vadd.s32 %v333, 128
        %vm335 = vcmp.lt.s32.totalorder %v333, 0
        %v336 = vsub.s32 0, %v333
        %v337 = vsel %vm335, %v336, %v333
        %v338 = vshrl.u32 %v337, 4
        %v339 = vand.u32 %v337, 15
        %v340 = vsub.s32 0, %v339
        %v341 = vsel %vm335, %v340, %v339
        %vm342 = vcmp.lt.s32.totalorder %v334, 0
        %v343 = vsub.s32 0, %v334
        %v344 = vsel %vm342, %v343, %v334
        %v345 = vshrl.u32 %v344, 4
        %v346 = vand.u32 %v344, 15
        %v347 = vsub.s32 0, %v346
        %v348 = vsel %vm342, %v347, %v346
        %vm349 = vcmp.ne.s32.totalorder %v341, 0
        %vm350 = vcmp.ne.s32.totalorder %v348, 0
        %vm351 = vcmp.lt.s32.totalorder %v341, 0
        %vm352 = vcmp.lt.s32.totalorder %v348, 0
        %vm353 = vmand %vm351, %vm349
        %vm354 = vmand %vm352, %vm350
        %v355 = vadd.s32 %v341, 16
        %v356 = vadd.s32 %v348, 16
        %v357 = vsel %vm353, %v355, %v341
        %v358 = vsel %vm354, %v356, %v348
        %vm359 = vcmp.ge.s32.totalorder %v333, 16
        %vm360 = vcmp.ge.s32.totalorder %v334, 16
        %vm361 = vcmp.lt.s32.totalorder %v333, 240
        %vm362 = vcmp.lt.s32.totalorder %v334, 240
        %vm363 = vcmp.ge.s32.totalorder %v357, 1
        %vm364 = vcmp.ge.s32.totalorder %v358, 1
        %vm365 = vcmp.lt.s32.totalorder %v357, 15
        %vm366 = vcmp.lt.s32.totalorder %v358, 15
        %v367 = vld [vmem:[%s1] sm:$0xf]
        %v368 = vld [vmem:[%s2] sm:$0xf]
        %370 = vset.pattern.permute.xlu0 0
        %371 = vperm.xlu0 %370, %v368
        %v372 = vpop.permute.xlu0 %371
        %v375 = vcombine.high %v331, %v331
        %vm376 = vcmask 31744
        %v378 = vsel %vm376, %v367, 0
        %vm380 = vcmask 1043456
        %v381 = vsel %vm380, %v331, 0
        %v383 = vsel %vm380, %v375, 0
        %385 = vmatprep.subr.mxu0 %v383
        %386 = vmatpush1.msra.mxu0 %v381
        %387 = vmatprep.subr.mxu0 0.0
        %388 = vmatpush1.msra.mxu0 0.0
        %389 = vmatprep.subr.mxu0 0.0
        %390 = vmatpush1.msra.mxu0 0.0
        %391 = vmatprep.subr.mxu0 0.0
        %392 = vmatpush1.msra.mxu0 0.0
        %393 = vmatprep.subr.mxu0 0.0
        %394 = vmatpush1.msra.mxu0 0.0
        %395 = vmatprep.subr.mxu0 0.0
        %396 = vmatpush1.msra.mxu0 0.0
        %397 = vmatprep.subr.mxu0 0.0
        %398 = vmatpush1.msra.mxu0 0.0
        %399 = vmatprep.subr.mxu0 0.0
        %400 = vmatpush1.msra.mxu0 0.0
        %401 = vmatprep.subr.mxu0 0.0
        %402 = vmatpush1.msra.mxu0 0.0
        %403 = vmatprep.subr.mxu0 0.0
        %404 = vmatpush1.msra.mxu0 0.0
        %405 = vmatprep.subr.mxu0 0.0
        %406 = vmatpush1.msra.mxu0 0.0
        %407 = vmatprep.subr.mxu0 0.0
        %408 = vmatpush1.msra.mxu0 0.0
        %409 = vmatprep.subr.mxu0 0.0
        %410 = vmatpush1.msra.mxu0 0.0
        %411 = vmatprep.subr.mxu0 0.0
        %412 = vmatpush1.msra.mxu0 0.0
        %413 = vmatprep.subr.mxu0 0.0
        %414 = vmatpush1.msra.mxu0 0.0
        %415 = vmatprep.subr.mxu0 0.0
        %416 = vmatpush1.msra.mxu0 0.0
        %417 = vmatprep.subr.mxu0 0.0
        %418 = vmatpush1.msra.mxu0 0.0
        %419 = vmatprep.subr.mxu0 0.0
        %420 = vmatpush1.msra.mxu0 0.0
        %421 = vmatprep.subr.mxu0 0.0
        %422 = vmatpush1.msra.mxu0 0.0
        %423 = vmatprep.subr.mxu0 0.0
        %424 = vmatpush1.msra.mxu0 0.0
        %425 = vmatprep.subr.mxu0 0.0
        %426 = vmatpush1.msra.mxu0 0.0
        %427 = vmatprep.subr.mxu0 0.0
        %428 = vmatpush1.msra.mxu0 0.0
        %429 = vmatprep.subr.mxu0 0.0
        %430 = vmatpush1.msra.mxu0 0.0
        %431 = vmatprep.subr.mxu0 0.0
        %432 = vmatpush1.msra.mxu0 0.0
        %433 = vmatprep.subr.mxu0 0.0
        %434 = vmatpush1.msra.mxu0 0.0
        %435 = vmatprep.subr.mxu0 0.0
        %436 = vmatpush1.msra.mxu0 0.0
        %437 = vmatprep.subr.mxu0 0.0
        %438 = vmatpush1.msra.mxu0 0.0
        %439 = vmatprep.subr.mxu0 0.0
        %440 = vmatpush1.msra.mxu0 0.0
        %441 = vmatprep.subr.mxu0 0.0
        %442 = vmatpush1.msra.mxu0 0.0
        %443 = vmatprep.subr.mxu0 0.0
        %444 = vmatpush1.msra.mxu0 0.0
        %445 = vmatprep.subr.mxu0 0.0
        %446 = vmatpush1.msra.mxu0 0.0
        %447 = vmatprep.subr.mxu0 0.0
        %448 = vmatpush1.msra.mxu0 0.0
        %449 = vmatprep.mubr.f32.mxu0 0.0
        %450 = vmatmul.mubr.f32.gmra.mrb[0].mxu0 %v378
        %v451 = vpop.f32.mrb[0].mxu0
        %v452 = vadd.f32 %v372, %v451
        %v453 = vpop.f32.mrb[0].mxu0
        %v454 = vadd.f32 %v372, %v453
        %455 = vdwg.mxu0
        %v456 = vld [vmem:[%s3] sm:$0xf]
        %457 = vrot.lane.b32.xlu0 %v452, 17
        %v458 = vpop.permute.xlu0 %457
        %459 = vrot.lane.b32.xlu0 %v454, 17
        %v460 = vpop.permute.xlu0 %459
        %vm461 = vcmp.lt.s32.totalorder %v333, 17
        %v462 = vsel %vm461, %v458, %v460
        %v463 = vsel %vm461, %v460, %v458
        %vm464 = vmand %vm359, %vm363
        %vm465 = vmand %vm360, %vm364
        %v466 = vsel %vm464, 1, 0
        %v467 = vsel %vm465, 1, 0
        %vm468 = vcmp.eq.s32.totalorder %v466, 1
        %vm469 = vcmp.eq.s32.totalorder %v467, 1
        %v470 = vsel %vm468, %v463, 0.0
        %v471 = vsel %vm469, %v462, 0.0
        %s472 = scalar_lea.vmem %s3, 4
        %v473 = vld [vmem:[%s472] sm:$0xf]
        %474 = vrot.lane.b32.xlu0 %v452, 16
        %v475 = vpop.permute.xlu0 %474
        %476 = vrot.lane.b32.xlu0 %v454, 16
        %v477 = vpop.permute.xlu0 %476
        %vm478 = vcmp.lt.s32.totalorder %v333, 16
        %v479 = vsel %vm478, %v475, %v477
        %v480 = vsel %vm478, %v477, %v475
        %v481 = vsel %vm359, 1, 0
        %v482 = vsel %vm360, 1, 0
        %vm483 = vcmp.eq.s32.totalorder %v481, 1
        %vm484 = vcmp.eq.s32.totalorder %v482, 1
        %v485 = vsel %vm483, %v480, 0.0
        %v486 = vsel %vm484, %v479, 0.0
        %v488 = vsel %vm376, %v473, 0
        %v491 = vsel %vm380, %v485, 0
        %v494 = vsel %vm380, %v486, 0
        %496 = vmatprep.subr.mxu0 %v494
        %497 = vmatpush1.msra.mxu0 %v491
        %498 = vmatprep.subr.mxu0 0.0
        %499 = vmatpush1.msra.mxu0 0.0
        %500 = vmatprep.subr.mxu0 0.0
        %501 = vmatpush1.msra.mxu0 0.0
        %502 = vmatprep.subr.mxu0 0.0
        %503 = vmatpush1.msra.mxu0 0.0
        %504 = vmatprep.subr.mxu0 0.0
        %505 = vmatpush1.msra.mxu0 0.0
        %506 = vmatprep.subr.mxu0 0.0
        %507 = vmatpush1.msra.mxu0 0.0
        %508 = vmatprep.subr.mxu0 0.0
        %509 = vmatpush1.msra.mxu0 0.0
        %510 = vmatprep.subr.mxu0 0.0
        %511 = vmatpush1.msra.mxu0 0.0
        %512 = vmatprep.subr.mxu0 0.0
        %513 = vmatpush1.msra.mxu0 0.0
        %514 = vmatprep.subr.mxu0 0.0
        %515 = vmatpush1.msra.mxu0 0.0
        %516 = vmatprep.subr.mxu0 0.0
        %517 = vmatpush1.msra.mxu0 0.0
        %518 = vmatprep.subr.mxu0 0.0
        %519 = vmatpush1.msra.mxu0 0.0
        %520 = vmatprep.subr.mxu0 0.0
        %521 = vmatpush1.msra.mxu0 0.0
        %522 = vmatprep.subr.mxu0 0.0
        %523 = vmatpush1.msra.mxu0 0.0
        %524 = vmatprep.subr.mxu0 0.0
        %525 = vmatpush1.msra.mxu0 0.0
        %526 = vmatprep.subr.mxu0 0.0
        %527 = vmatpush1.msra.mxu0 0.0
        %528 = vmatprep.subr.mxu0 0.0
        %529 = vmatpush1.msra.mxu0 0.0
        %530 = vmatprep.subr.mxu0 0.0
        %531 = vmatpush1.msra.mxu0 0.0
        %532 = vmatprep.subr.mxu0 0.0
        %533 = vmatpush1.msra.mxu0 0.0
        %534 = vmatprep.subr.mxu0 0.0
        %535 = vmatpush1.msra.mxu0 0.0
        %536 = vmatprep.subr.mxu0 0.0
        %537 = vmatpush1.msra.mxu0 0.0
        %538 = vmatprep.subr.mxu0 0.0
        %539 = vmatpush1.msra.mxu0 0.0
        %540 = vmatprep.subr.mxu0 0.0
        %541 = vmatpush1.msra.mxu0 0.0
        %542 = vmatprep.subr.mxu0 0.0
        %543 = vmatpush1.msra.mxu0 0.0
        %544 = vmatprep.subr.mxu0 0.0
        %545 = vmatpush1.msra.mxu0 0.0
        %546 = vmatprep.subr.mxu0 0.0
        %547 = vmatpush1.msra.mxu0 0.0
        %548 = vmatprep.subr.mxu0 0.0
        %549 = vmatpush1.msra.mxu0 0.0
        %550 = vmatprep.subr.mxu0 0.0
        %551 = vmatpush1.msra.mxu0 0.0
        %552 = vmatprep.subr.mxu0 0.0
        %553 = vmatpush1.msra.mxu0 0.0
        %554 = vmatprep.subr.mxu0 0.0
        %555 = vmatpush1.msra.mxu0 0.0
        %556 = vmatprep.subr.mxu0 0.0
        %557 = vmatpush1.msra.mxu0 0.0
        %558 = vmatprep.subr.mxu0 0.0
        %559 = vmatpush1.msra.mxu0 0.0
        %560 = vmatprep.mubr.f32.mxu0 0.0
        %561 = vmatmul.mubr.f32.gmra.mrb[0].mxu0 %v488
        %v562 = vpop.f32.mrb[0].mxu0
        %v563 = vadd.f32 0.0, %v562
        %v564 = vpop.f32.mrb[0].mxu0
        %v565 = vadd.f32 0.0, %v564
        %566 = vdwg.mxu0
        %v568 = vsel %vm376, %v456, 0
        %v571 = vsel %vm380, %v470, 0
        %v574 = vsel %vm380, %v471, 0
        %576 = vmatprep.subr.mxu0 %v574
        %577 = vmatpush1.msra.mxu0 %v571
        %578 = vmatprep.subr.mxu0 0.0
        %579 = vmatpush1.msra.mxu0 0.0
        %580 = vmatprep.subr.mxu0 0.0
        %581 = vmatpush1.msra.mxu0 0.0
        %582 = vmatprep.subr.mxu0 0.0
        %583 = vmatpush1.msra.mxu0 0.0
        %584 = vmatprep.subr.mxu0 0.0
        %585 = vmatpush1.msra.mxu0 0.0
        %586 = vmatprep.subr.mxu0 0.0
        %587 = vmatpush1.msra.mxu0 0.0
        %588 = vmatprep.subr.mxu0 0.0
        %589 = vmatpush1.msra.mxu0 0.0
        %590 = vmatprep.subr.mxu0 0.0
        %591 = vmatpush1.msra.mxu0 0.0
        %592 = vmatprep.subr.mxu0 0.0
        %593 = vmatpush1.msra.mxu0 0.0
        %594 = vmatprep.subr.mxu0 0.0
        %595 = vmatpush1.msra.mxu0 0.0
        %596 = vmatprep.subr.mxu0 0.0
        %597 = vmatpush1.msra.mxu0 0.0
        %598 = vmatprep.subr.mxu0 0.0
        %599 = vmatpush1.msra.mxu0 0.0
        %600 = vmatprep.subr.mxu0 0.0
        %601 = vmatpush1.msra.mxu0 0.0
        %602 = vmatprep.subr.mxu0 0.0
        %603 = vmatpush1.msra.mxu0 0.0
        %604 = vmatprep.subr.mxu0 0.0
        %605 = vmatpush1.msra.mxu0 0.0
        %606 = vmatprep.subr.mxu0 0.0
        %607 = vmatpush1.msra.mxu0 0.0
        %608 = vmatprep.subr.mxu0 0.0
        %609 = vmatpush1.msra.mxu0 0.0
        %610 = vmatprep.subr.mxu0 0.0
        %611 = vmatpush1.msra.mxu0 0.0
        %612 = vmatprep.subr.mxu0 0.0
        %613 = vmatpush1.msra.mxu0 0.0
        %614 = vmatprep.subr.mxu0 0.0
        %615 = vmatpush1.msra.mxu0 0.0
        %616 = vmatprep.subr.mxu0 0.0
        %617 = vmatpush1.msra.mxu0 0.0
        %618 = vmatprep.subr.mxu0 0.0
        %619 = vmatpush1.msra.mxu0 0.0
        %620 = vmatprep.subr.mxu0 0.0
        %621 = vmatpush1.msra.mxu0 0.0
        %622 = vmatprep.subr.mxu0 0.0
        %623 = vmatpush1.msra.mxu0 0.0
        %624 = vmatprep.subr.mxu0 0.0
        %625 = vmatpush1.msra.mxu0 0.0
        %626 = vmatprep.subr.mxu0 0.0
        %627 = vmatpush1.msra.mxu0 0.0
        %628 = vmatprep.subr.mxu0 0.0
        %629 = vmatpush1.msra.mxu0 0.0
        %630 = vmatprep.subr.mxu0 0.0
        %631 = vmatpush1.msra.mxu0 0.0
        %632 = vmatprep.subr.mxu0 0.0
        %633 = vmatpush1.msra.mxu0 0.0
        %634 = vmatprep.subr.mxu0 0.0
        %635 = vmatpush1.msra.mxu0 0.0
        %636 = vmatprep.subr.mxu0 0.0
        %637 = vmatpush1.msra.mxu0 0.0
        %638 = vmatprep.subr.mxu0 0.0
        %639 = vmatpush1.msra.mxu0 0.0
        %640 = vmatprep.mubr.f32.mxu0 0.0
        %641 = vmatmul.mubr.f32.gmra.mrb[0].mxu0 %v568
        %v642 = vpop.f32.mrb[0].mxu0
        %v643 = vadd.f32 %v563, %v642
        %v644 = vpop.f32.mrb[0].mxu0
        %v645 = vadd.f32 %v565, %v644
        %646 = vdwg.mxu0
        %s647 = scalar_lea.vmem %s3, 8
        %v648 = vld [vmem:[%s647] sm:$0xf]
        %649 = vrot.lane.b32.xlu0 %v452, 15
        %v650 = vpop.permute.xlu0 %649
        %651 = vrot.lane.b32.xlu0 %v454, 15
        %v652 = vpop.permute.xlu0 %651
        %vm653 = vcmp.lt.s32.totalorder %v333, 15
        %v654 = vsel %vm653, %v650, %v652
        %v655 = vsel %vm653, %v652, %v650
        %vm656 = vmand %vm359, %vm365
        %vm657 = vmand %vm360, %vm366
        %v658 = vsel %vm656, 1, 0
        %v659 = vsel %vm657, 1, 0
        %vm660 = vcmp.eq.s32.totalorder %v658, 1
        %vm661 = vcmp.eq.s32.totalorder %v659, 1
        %v662 = vsel %vm660, %v655, 0.0
        %v663 = vsel %vm661, %v654, 0.0
        %v665 = vsel %vm376, %v648, 0
        %v668 = vsel %vm380, %v662, 0
        %v671 = vsel %vm380, %v663, 0
        %673 = vmatprep.subr.mxu0 %v671
        %674 = vmatpush1.msra.mxu0 %v668
        %675 = vmatprep.subr.mxu0 0.0
        %676 = vmatpush1.msra.mxu0 0.0
        %677 = vmatprep.subr.mxu0 0.0
        %678 = vmatpush1.msra.mxu0 0.0
        %679 = vmatprep.subr.mxu0 0.0
        %680 = vmatpush1.msra.mxu0 0.0
        %681 = vmatprep.subr.mxu0 0.0
        %682 = vmatpush1.msra.mxu0 0.0
        %683 = vmatprep.subr.mxu0 0.0
        %684 = vmatpush1.msra.mxu0 0.0
        %685 = vmatprep.subr.mxu0 0.0
        %686 = vmatpush1.msra.mxu0 0.0
        %687 = vmatprep.subr.mxu0 0.0
        %688 = vmatpush1.msra.mxu0 0.0
        %689 = vmatprep.subr.mxu0 0.0
        %690 = vmatpush1.msra.mxu0 0.0
        %691 = vmatprep.subr.mxu0 0.0
        %692 = vmatpush1.msra.mxu0 0.0
        %693 = vmatprep.subr.mxu0 0.0
        %694 = vmatpush1.msra.mxu0 0.0
        %695 = vmatprep.subr.mxu0 0.0
        %696 = vmatpush1.msra.mxu0 0.0
        %697 = vmatprep.subr.mxu0 0.0
        %698 = vmatpush1.msra.mxu0 0.0
        %699 = vmatprep.subr.mxu0 0.0
        %700 = vmatpush1.msra.mxu0 0.0
        %701 = vmatprep.subr.mxu0 0.0
        %702 = vmatpush1.msra.mxu0 0.0
        %703 = vmatprep.subr.mxu0 0.0
        %704 = vmatpush1.msra.mxu0 0.0
        %705 = vmatprep.subr.mxu0 0.0
        %706 = vmatpush1.msra.mxu0 0.0
        %707 = vmatprep.subr.mxu0 0.0
        %708 = vmatpush1.msra.mxu0 0.0
        %709 = vmatprep.subr.mxu0 0.0
        %710 = vmatpush1.msra.mxu0 0.0
        %711 = vmatprep.subr.mxu0 0.0
        %712 = vmatpush1.msra.mxu0 0.0
        %713 = vmatprep.subr.mxu0 0.0
        %714 = vmatpush1.msra.mxu0 0.0
        %715 = vmatprep.subr.mxu0 0.0
        %716 = vmatpush1.msra.mxu0 0.0
        %717 = vmatprep.subr.mxu0 0.0
        %718 = vmatpush1.msra.mxu0 0.0
        %719 = vmatprep.subr.mxu0 0.0
        %720 = vmatpush1.msra.mxu0 0.0
        %721 = vmatprep.subr.mxu0 0.0
        %722 = vmatpush1.msra.mxu0 0.0
        %723 = vmatprep.subr.mxu0 0.0
        %724 = vmatpush1.msra.mxu0 0.0
        %725 = vmatprep.subr.mxu0 0.0
        %726 = vmatpush1.msra.mxu0 0.0
        %727 = vmatprep.subr.mxu0 0.0
        %728 = vmatpush1.msra.mxu0 0.0
        %729 = vmatprep.subr.mxu0 0.0
        %730 = vmatpush1.msra.mxu0 0.0
        %731 = vmatprep.subr.mxu0 0.0
        %732 = vmatpush1.msra.mxu0 0.0
        %733 = vmatprep.subr.mxu0 0.0
        %734 = vmatpush1.msra.mxu0 0.0
        %735 = vmatprep.subr.mxu0 0.0
        %736 = vmatpush1.msra.mxu0 0.0
        %737 = vmatprep.mubr.f32.mxu0 0.0
        %738 = vmatmul.mubr.f32.gmra.mrb[0].mxu0 %v665
        %v739 = vpop.f32.mrb[0].mxu0
        %v740 = vadd.f32 0.0, %v739
        %v741 = vpop.f32.mrb[0].mxu0
        %v742 = vadd.f32 0.0, %v741
        %743 = vdwg.mxu0
        %v744 = vadd.f32 %v643, %v740
        %v745 = vadd.f32 %v645, %v742
        %s746 = scalar_lea.vmem %s3, 12
        %v747 = vld [vmem:[%s746] sm:$0xf]
        %748 = vrot.lane.b32.xlu0 %v452, 1
        %v749 = vpop.permute.xlu0 %748
        %750 = vrot.lane.b32.xlu0 %v454, 1
        %v751 = vpop.permute.xlu0 %750
        %vm752 = vcmp.lt.s32.totalorder %v333, 1
        %v753 = vsel %vm752, %v749, %v751
        %v754 = vsel %vm752, %v751, %v749
        %v755 = vsel %vm363, 1, 0
        %v756 = vsel %vm364, 1, 0
        %vm757 = vcmp.eq.s32.totalorder %v755, 1
        %vm758 = vcmp.eq.s32.totalorder %v756, 1
        %v759 = vsel %vm757, %v754, 0.0
        %v760 = vsel %vm758, %v753, 0.0
        %v762 = vsel %vm376, %v747, 0
        %v765 = vsel %vm380, %v759, 0
        %v768 = vsel %vm380, %v760, 0
        %770 = vmatprep.subr.mxu0 %v768
        %771 = vmatpush1.msra.mxu0 %v765
        %772 = vmatprep.subr.mxu0 0.0
        %773 = vmatpush1.msra.mxu0 0.0
        %774 = vmatprep.subr.mxu0 0.0
        %775 = vmatpush1.msra.mxu0 0.0
        %776 = vmatprep.subr.mxu0 0.0
        %777 = vmatpush1.msra.mxu0 0.0
        %778 = vmatprep.subr.mxu0 0.0
        %779 = vmatpush1.msra.mxu0 0.0
        %780 = vmatprep.subr.mxu0 0.0
        %781 = vmatpush1.msra.mxu0 0.0
        %782 = vmatprep.subr.mxu0 0.0
        %783 = vmatpush1.msra.mxu0 0.0
        %784 = vmatprep.subr.mxu0 0.0
        %785 = vmatpush1.msra.mxu0 0.0
        %786 = vmatprep.subr.mxu0 0.0
        %787 = vmatpush1.msra.mxu0 0.0
        %788 = vmatprep.subr.mxu0 0.0
        %789 = vmatpush1.msra.mxu0 0.0
        %790 = vmatprep.subr.mxu0 0.0
        %791 = vmatpush1.msra.mxu0 0.0
        %792 = vmatprep.subr.mxu0 0.0
        %793 = vmatpush1.msra.mxu0 0.0
        %794 = vmatprep.subr.mxu0 0.0
        %795 = vmatpush1.msra.mxu0 0.0
        %796 = vmatprep.subr.mxu0 0.0
        %797 = vmatpush1.msra.mxu0 0.0
        %798 = vmatprep.subr.mxu0 0.0
        %799 = vmatpush1.msra.mxu0 0.0
        %800 = vmatprep.subr.mxu0 0.0
        %801 = vmatpush1.msra.mxu0 0.0
        %802 = vmatprep.subr.mxu0 0.0
        %803 = vmatpush1.msra.mxu0 0.0
        %804 = vmatprep.subr.mxu0 0.0
        %805 = vmatpush1.msra.mxu0 0.0
        %806 = vmatprep.subr.mxu0 0.0
        %807 = vmatpush1.msra.mxu0 0.0
        %808 = vmatprep.subr.mxu0 0.0
        %809 = vmatpush1.msra.mxu0 0.0
        %810 = vmatprep.subr.mxu0 0.0
        %811 = vmatpush1.msra.mxu0 0.0
        %812 = vmatprep.subr.mxu0 0.0
        %813 = vmatpush1.msra.mxu0 0.0
        %814 = vmatprep.subr.mxu0 0.0
        %815 = vmatpush1.msra.mxu0 0.0
        %816 = vmatprep.subr.mxu0 0.0
        %817 = vmatpush1.msra.mxu0 0.0
        %818 = vmatprep.subr.mxu0 0.0
        %819 = vmatpush1.msra.mxu0 0.0
        %820 = vmatprep.subr.mxu0 0.0
        %821 = vmatpush1.msra.mxu0 0.0
        %822 = vmatprep.subr.mxu0 0.0
        %823 = vmatpush1.msra.mxu0 0.0
        %824 = vmatprep.subr.mxu0 0.0
        %825 = vmatpush1.msra.mxu0 0.0
        %826 = vmatprep.subr.mxu0 0.0
        %827 = vmatpush1.msra.mxu0 0.0
        %828 = vmatprep.subr.mxu0 0.0
        %829 = vmatpush1.msra.mxu0 0.0
        %830 = vmatprep.subr.mxu0 0.0
        %831 = vmatpush1.msra.mxu0 0.0
        %832 = vmatprep.subr.mxu0 0.0
        %833 = vmatpush1.msra.mxu0 0.0
        %834 = vmatprep.mubr.f32.mxu0 0.0
        %835 = vmatmul.mubr.f32.gmra.mrb[0].mxu0 %v762
        %v836 = vpop.f32.mrb[0].mxu0
        %v837 = vadd.f32 0.0, %v836
        %v838 = vpop.f32.mrb[0].mxu0
        %v839 = vadd.f32 0.0, %v838
        %840 = vdwg.mxu0
        %v841 = vadd.f32 %v744, %v837
        %v842 = vadd.f32 %v745, %v839
        %s843 = scalar_lea.vmem %s3, 16
        %v844 = vld [vmem:[%s843] sm:$0xf]
        %v846 = vsel %vm376, %v844, 0
        %v849 = vsel %vm380, %v452, 0
        %v852 = vsel %vm380, %v454, 0
        %854 = vmatprep.subr.mxu0 %v852
        %855 = vmatpush1.msra.mxu0 %v849
        %856 = vmatprep.subr.mxu0 0.0
        %857 = vmatpush1.msra.mxu0 0.0
        %858 = vmatprep.subr.mxu0 0.0
        %859 = vmatpush1.msra.mxu0 0.0
        %860 = vmatprep.subr.mxu0 0.0
        %861 = vmatpush1.msra.mxu0 0.0
        %862 = vmatprep.subr.mxu0 0.0
        %863 = vmatpush1.msra.mxu0 0.0
        %864 = vmatprep.subr.mxu0 0.0
        %865 = vmatpush1.msra.mxu0 0.0
        %866 = vmatprep.subr.mxu0 0.0
        %867 = vmatpush1.msra.mxu0 0.0
        %868 = vmatprep.subr.mxu0 0.0
        %869 = vmatpush1.msra.mxu0 0.0
        %870 = vmatprep.subr.mxu0 0.0
        %871 = vmatpush1.msra.mxu0 0.0
        %872 = vmatprep.subr.mxu0 0.0
        %873 = vmatpush1.msra.mxu0 0.0
        %874 = vmatprep.subr.mxu0 0.0
        %875 = vmatpush1.msra.mxu0 0.0
        %876 = vmatprep.subr.mxu0 0.0
        %877 = vmatpush1.msra.mxu0 0.0
        %878 = vmatprep.subr.mxu0 0.0
        %879 = vmatpush1.msra.mxu0 0.0
        %880 = vmatprep.subr.mxu0 0.0
        %881 = vmatpush1.msra.mxu0 0.0
        %882 = vmatprep.subr.mxu0 0.0
        %883 = vmatpush1.msra.mxu0 0.0
        %884 = vmatprep.subr.mxu0 0.0
        %885 = vmatpush1.msra.mxu0 0.0
        %886 = vmatprep.subr.mxu0 0.0
        %887 = vmatpush1.msra.mxu0 0.0
        %888 = vmatprep.subr.mxu0 0.0
        %889 = vmatpush1.msra.mxu0 0.0
        %890 = vmatprep.subr.mxu0 0.0
        %891 = vmatpush1.msra.mxu0 0.0
        %892 = vmatprep.subr.mxu0 0.0
        %893 = vmatpush1.msra.mxu0 0.0
        %894 = vmatprep.subr.mxu0 0.0
        %895 = vmatpush1.msra.mxu0 0.0
        %896 = vmatprep.subr.mxu0 0.0
        %897 = vmatpush1.msra.mxu0 0.0
        %898 = vmatprep.subr.mxu0 0.0
        %899 = vmatpush1.msra.mxu0 0.0
        %900 = vmatprep.subr.mxu0 0.0
        %901 = vmatpush1.msra.mxu0 0.0
        %902 = vmatprep.subr.mxu0 0.0
        %903 = vmatpush1.msra.mxu0 0.0
        %904 = vmatprep.subr.mxu0 0.0
        %905 = vmatpush1.msra.mxu0 0.0
        %906 = vmatprep.subr.mxu0 0.0
        %907 = vmatpush1.msra.mxu0 0.0
        %908 = vmatprep.subr.mxu0 0.0
        %909 = vmatpush1.msra.mxu0 0.0
        %910 = vmatprep.subr.mxu0 0.0
        %911 = vmatpush1.msra.mxu0 0.0
        %912 = vmatprep.subr.mxu0 0.0
        %913 = vmatpush1.msra.mxu0 0.0
        %914 = vmatprep.subr.mxu0 0.0
        %915 = vmatpush1.msra.mxu0 0.0
        %916 = vmatprep.subr.mxu0 0.0
        %917 = vmatpush1.msra.mxu0 0.0
        %918 = vmatprep.mubr.f32.mxu0 0.0
        %919 = vmatmul.mubr.f32.gmra.mrb[0].mxu0 %v846
        %v920 = vpop.f32.mrb[0].mxu0
        %v921 = vadd.f32 0.0, %v920
        %v922 = vpop.f32.mrb[0].mxu0
        %v923 = vadd.f32 0.0, %v922
        %924 = vdwg.mxu0
        %v925 = vadd.f32 %v841, %v921
        %v926 = vadd.f32 %v842, %v923
        %s927 = scalar_lea.vmem %s3, 20
        %v928 = vld [vmem:[%s927] sm:$0xf]
        %929 = vrot.lane.b32.xlu0 %v452, 127
        %v930 = vpop.permute.xlu0 %929
        %931 = vrot.lane.b32.xlu0 %v454, 127
        %v932 = vpop.permute.xlu0 %931
        %vm933 = vcmp.lt.s32.totalorder %v333, 127
        %v934 = vsel %vm933, %v930, %v932
        %v935 = vsel %vm933, %v932, %v930
        %v936 = vsel %vm365, 1, 0
        %v937 = vsel %vm366, 1, 0
        %vm938 = vcmp.eq.s32.totalorder %v936, 1
        %vm939 = vcmp.eq.s32.totalorder %v937, 1
        %v940 = vsel %vm938, %v934, 0.0
        %v941 = vsel %vm939, %v935, 0.0
        %v943 = vsel %vm376, %v928, 0
        %v946 = vsel %vm380, %v940, 0
        %v949 = vsel %vm380, %v941, 0
        %951 = vmatprep.subr.mxu0 %v949
        %952 = vmatpush1.msra.mxu0 %v946
        %953 = vmatprep.subr.mxu0 0.0
        %954 = vmatpush1.msra.mxu0 0.0
        %955 = vmatprep.subr.mxu0 0.0
        %956 = vmatpush1.msra.mxu0 0.0
        %957 = vmatprep.subr.mxu0 0.0
        %958 = vmatpush1.msra.mxu0 0.0
        %959 = vmatprep.subr.mxu0 0.0
        %960 = vmatpush1.msra.mxu0 0.0
        %961 = vmatprep.subr.mxu0 0.0
        %962 = vmatpush1.msra.mxu0 0.0
        %963 = vmatprep.subr.mxu0 0.0
        %964 = vmatpush1.msra.mxu0 0.0
        %965 = vmatprep.subr.mxu0 0.0
        %966 = vmatpush1.msra.mxu0 0.0
        %967 = vmatprep.subr.mxu0 0.0
        %968 = vmatpush1.msra.mxu0 0.0
        %969 = vmatprep.subr.mxu0 0.0
        %970 = vmatpush1.msra.mxu0 0.0
        %971 = vmatprep.subr.mxu0 0.0
        %972 = vmatpush1.msra.mxu0 0.0
        %973 = vmatprep.subr.mxu0 0.0
        %974 = vmatpush1.msra.mxu0 0.0
        %975 = vmatprep.subr.mxu0 0.0
        %976 = vmatpush1.msra.mxu0 0.0
        %977 = vmatprep.subr.mxu0 0.0
        %978 = vmatpush1.msra.mxu0 0.0
        %979 = vmatprep.subr.mxu0 0.0
        %980 = vmatpush1.msra.mxu0 0.0
        %981 = vmatprep.subr.mxu0 0.0
        %982 = vmatpush1.msra.mxu0 0.0
        %983 = vmatprep.subr.mxu0 0.0
        %984 = vmatpush1.msra.mxu0 0.0
        %985 = vmatprep.subr.mxu0 0.0
        %986 = vmatpush1.msra.mxu0 0.0
        %987 = vmatprep.subr.mxu0 0.0
        %988 = vmatpush1.msra.mxu0 0.0
        %989 = vmatprep.subr.mxu0 0.0
        %990 = vmatpush1.msra.mxu0 0.0
        %991 = vmatprep.subr.mxu0 0.0
        %992 = vmatpush1.msra.mxu0 0.0
        %993 = vmatprep.subr.mxu0 0.0
        %994 = vmatpush1.msra.mxu0 0.0
        %995 = vmatprep.subr.mxu0 0.0
        %996 = vmatpush1.msra.mxu0 0.0
        %997 = vmatprep.subr.mxu0 0.0
        %998 = vmatpush1.msra.mxu0 0.0
        %999 = vmatprep.subr.mxu0 0.0
        %1000 = vmatpush1.msra.mxu0 0.0
        %1001 = vmatprep.subr.mxu0 0.0
        %1002 = vmatpush1.msra.mxu0 0.0
        %1003 = vmatprep.subr.mxu0 0.0
        %1004 = vmatpush1.msra.mxu0 0.0
        %1005 = vmatprep.subr.mxu0 0.0
        %1006 = vmatpush1.msra.mxu0 0.0
        %1007 = vmatprep.subr.mxu0 0.0
        %1008 = vmatpush1.msra.mxu0 0.0
        %1009 = vmatprep.subr.mxu0 0.0
        %1010 = vmatpush1.msra.mxu0 0.0
        %1011 = vmatprep.subr.mxu0 0.0
        %1012 = vmatpush1.msra.mxu0 0.0
        %1013 = vmatprep.subr.mxu0 0.0
        %1014 = vmatpush1.msra.mxu0 0.0
        %1015 = vmatprep.mubr.f32.mxu0 0.0
        %1016 = vmatmul.mubr.f32.gmra.mrb[0].mxu0 %v943
        %v1017 = vpop.f32.mrb[0].mxu0
        %v1018 = vadd.f32 0.0, %v1017
        %v1019 = vpop.f32.mrb[0].mxu0
        %v1020 = vadd.f32 0.0, %v1019
        %1021 = vdwg.mxu0
        %v1022 = vadd.f32 %v925, %v1018
        %v1023 = vadd.f32 %v926, %v1020
        %s1024 = scalar_lea.vmem %s3, 24
        %v1025 = vld [vmem:[%s1024] sm:$0xf]
        %1026 = vrot.lane.b32.xlu0 %v452, 113
        %v1027 = vpop.permute.xlu0 %1026
        %1028 = vrot.lane.b32.xlu0 %v454, 113
        %v1029 = vpop.permute.xlu0 %1028
        %vm1030 = vcmp.lt.s32.totalorder %v333, 113
        %v1031 = vsel %vm1030, %v1027, %v1029
        %v1032 = vsel %vm1030, %v1029, %v1027
        %vm1033 = vmand %vm361, %vm363
        %vm1034 = vmand %vm362, %vm364
        %v1035 = vsel %vm1033, 1, 0
        %v1036 = vsel %vm1034, 1, 0
        %vm1037 = vcmp.eq.s32.totalorder %v1035, 1
        %vm1038 = vcmp.eq.s32.totalorder %v1036, 1
        %v1039 = vsel %vm1037, %v1031, 0.0
        %v1040 = vsel %vm1038, %v1032, 0.0
        %v1042 = vsel %vm376, %v1025, 0
        %v1045 = vsel %vm380, %v1039, 0
        %v1048 = vsel %vm380, %v1040, 0
        %1050 = vmatprep.subr.mxu0 %v1048
        %1051 = vmatpush1.msra.mxu0 %v1045
        %1052 = vmatprep.subr.mxu0 0.0
        %1053 = vmatpush1.msra.mxu0 0.0
        %1054 = vmatprep.subr.mxu0 0.0
        %1055 = vmatpush1.msra.mxu0 0.0
        %1056 = vmatprep.subr.mxu0 0.0
        %1057 = vmatpush1.msra.mxu0 0.0
        %1058 = vmatprep.subr.mxu0 0.0
        %1059 = vmatpush1.msra.mxu0 0.0
        %1060 = vmatprep.subr.mxu0 0.0
        %1061 = vmatpush1.msra.mxu0 0.0
        %1062 = vmatprep.subr.mxu0 0.0
        %1063 = vmatpush1.msra.mxu0 0.0
        %1064 = vmatprep.subr.mxu0 0.0
        %1065 = vmatpush1.msra.mxu0 0.0
        %1066 = vmatprep.subr.mxu0 0.0
        %1067 = vmatpush1.msra.mxu0 0.0
        %1068 = vmatprep.subr.mxu0 0.0
        %1069 = vmatpush1.msra.mxu0 0.0
        %1070 = vmatprep.subr.mxu0 0.0
        %1071 = vmatpush1.msra.mxu0 0.0
        %1072 = vmatprep.subr.mxu0 0.0
        %1073 = vmatpush1.msra.mxu0 0.0
        %1074 = vmatprep.subr.mxu0 0.0
        %1075 = vmatpush1.msra.mxu0 0.0
        %1076 = vmatprep.subr.mxu0 0.0
        %1077 = vmatpush1.msra.mxu0 0.0
        %1078 = vmatprep.subr.mxu0 0.0
        %1079 = vmatpush1.msra.mxu0 0.0
        %1080 = vmatprep.subr.mxu0 0.0
        %1081 = vmatpush1.msra.mxu0 0.0
        %1082 = vmatprep.subr.mxu0 0.0
        %1083 = vmatpush1.msra.mxu0 0.0
        %1084 = vmatprep.subr.mxu0 0.0
        %1085 = vmatpush1.msra.mxu0 0.0
        %1086 = vmatprep.subr.mxu0 0.0
        %1087 = vmatpush1.msra.mxu0 0.0
        %1088 = vmatprep.subr.mxu0 0.0
        %1089 = vmatpush1.msra.mxu0 0.0
        %1090 = vmatprep.subr.mxu0 0.0
        %1091 = vmatpush1.msra.mxu0 0.0
        %1092 = vmatprep.subr.mxu0 0.0
        %1093 = vmatpush1.msra.mxu0 0.0
        %1094 = vmatprep.subr.mxu0 0.0
        %1095 = vmatpush1.msra.mxu0 0.0
        %1096 = vmatprep.subr.mxu0 0.0
        %1097 = vmatpush1.msra.mxu0 0.0
        %1098 = vmatprep.subr.mxu0 0.0
        %1099 = vmatpush1.msra.mxu0 0.0
        %1100 = vmatprep.subr.mxu0 0.0
        %1101 = vmatpush1.msra.mxu0 0.0
        %1102 = vmatprep.subr.mxu0 0.0
        %1103 = vmatpush1.msra.mxu0 0.0
        %1104 = vmatprep.subr.mxu0 0.0
        %1105 = vmatpush1.msra.mxu0 0.0
        %1106 = vmatprep.subr.mxu0 0.0
        %1107 = vmatpush1.msra.mxu0 0.0
        %1108 = vmatprep.subr.mxu0 0.0
        %1109 = vmatpush1.msra.mxu0 0.0
        %1110 = vmatprep.subr.mxu0 0.0
        %1111 = vmatpush1.msra.mxu0 0.0
        %1112 = vmatprep.subr.mxu0 0.0
        %1113 = vmatpush1.msra.mxu0 0.0
        %1114 = vmatprep.mubr.f32.mxu0 0.0
        %1115 = vmatmul.mubr.f32.gmra.mrb[0].mxu0 %v1042
        %v1116 = vpop.f32.mrb[0].mxu0
        %v1117 = vadd.f32 0.0, %v1116
        %v1118 = vpop.f32.mrb[0].mxu0
        %v1119 = vadd.f32 0.0, %v1118
        %1120 = vdwg.mxu0
        %v1121 = vadd.f32 %v1022, %v1117
        %v1122 = vadd.f32 %v1023, %v1119
        %s1123 = scalar_lea.vmem %s3, 28
        %v1124 = vld [vmem:[%s1123] sm:$0xf]
        %1125 = vrot.lane.b32.xlu0 %v452, 112
        %v1126 = vpop.permute.xlu0 %1125
        %1127 = vrot.lane.b32.xlu0 %v454, 112
        %v1128 = vpop.permute.xlu0 %1127
        %vm1129 = vcmp.lt.s32.totalorder %v333, 112
        %v1130 = vsel %vm1129, %v1126, %v1128
        %v1131 = vsel %vm1129, %v1128, %v1126
        %v1132 = vsel %vm361, 1, 0
        %v1133 = vsel %vm362, 1, 0
        %vm1134 = vcmp.eq.s32.totalorder %v1132, 1
        %vm1135 = vcmp.eq.s32.totalorder %v1133, 1
        %v1136 = vsel %vm1134, %v1130, 0.0
        %v1137 = vsel %vm1135, %v1131, 0.0
        %v1139 = vsel %vm376, %v1124, 0
        %v1142 = vsel %vm380, %v1136, 0
        %v1145 = vsel %vm380, %v1137, 0
        %1147 = vmatprep.subr.mxu0 %v1145
        %1148 = vmatpush1.msra.mxu0 %v1142
        %1149 = vmatprep.subr.mxu0 0.0
        %1150 = vmatpush1.msra.mxu0 0.0
        %1151 = vmatprep.subr.mxu0 0.0
        %1152 = vmatpush1.msra.mxu0 0.0
        %1153 = vmatprep.subr.mxu0 0.0
        %1154 = vmatpush1.msra.mxu0 0.0
        %1155 = vmatprep.subr.mxu0 0.0
        %1156 = vmatpush1.msra.mxu0 0.0
        %1157 = vmatprep.subr.mxu0 0.0
        %1158 = vmatpush1.msra.mxu0 0.0
        %1159 = vmatprep.subr.mxu0 0.0
        %1160 = vmatpush1.msra.mxu0 0.0
        %1161 = vmatprep.subr.mxu0 0.0
        %1162 = vmatpush1.msra.mxu0 0.0
        %1163 = vmatprep.subr.mxu0 0.0
        %1164 = vmatpush1.msra.mxu0 0.0
        %1165 = vmatprep.subr.mxu0 0.0
        %1166 = vmatpush1.msra.mxu0 0.0
        %1167 = vmatprep.subr.mxu0 0.0
        %1168 = vmatpush1.msra.mxu0 0.0
        %1169 = vmatprep.subr.mxu0 0.0
        %1170 = vmatpush1.msra.mxu0 0.0
        %1171 = vmatprep.subr.mxu0 0.0
        %1172 = vmatpush1.msra.mxu0 0.0
        %1173 = vmatprep.subr.mxu0 0.0
        %1174 = vmatpush1.msra.mxu0 0.0
        %1175 = vmatprep.subr.mxu0 0.0
        %1176 = vmatpush1.msra.mxu0 0.0
        %1177 = vmatprep.subr.mxu0 0.0
        %1178 = vmatpush1.msra.mxu0 0.0
        %1179 = vmatprep.subr.mxu0 0.0
        %1180 = vmatpush1.msra.mxu0 0.0
        %1181 = vmatprep.subr.mxu0 0.0
        %1182 = vmatpush1.msra.mxu0 0.0
        %1183 = vmatprep.subr.mxu0 0.0
        %1184 = vmatpush1.msra.mxu0 0.0
        %1185 = vmatprep.subr.mxu0 0.0
        %1186 = vmatpush1.msra.mxu0 0.0
        %1187 = vmatprep.subr.mxu0 0.0
        %1188 = vmatpush1.msra.mxu0 0.0
        %1189 = vmatprep.subr.mxu0 0.0
        %1190 = vmatpush1.msra.mxu0 0.0
        %1191 = vmatprep.subr.mxu0 0.0
        %1192 = vmatpush1.msra.mxu0 0.0
        %1193 = vmatprep.subr.mxu0 0.0
        %1194 = vmatpush1.msra.mxu0 0.0
        %1195 = vmatprep.subr.mxu0 0.0
        %1196 = vmatpush1.msra.mxu0 0.0
        %1197 = vmatprep.subr.mxu0 0.0
        %1198 = vmatpush1.msra.mxu0 0.0
        %1199 = vmatprep.subr.mxu0 0.0
        %1200 = vmatpush1.msra.mxu0 0.0
        %1201 = vmatprep.subr.mxu0 0.0
        %1202 = vmatpush1.msra.mxu0 0.0
        %1203 = vmatprep.subr.mxu0 0.0
        %1204 = vmatpush1.msra.mxu0 0.0
        %1205 = vmatprep.subr.mxu0 0.0
        %1206 = vmatpush1.msra.mxu0 0.0
        %1207 = vmatprep.subr.mxu0 0.0
        %1208 = vmatpush1.msra.mxu0 0.0
        %1209 = vmatprep.subr.mxu0 0.0
        %1210 = vmatpush1.msra.mxu0 0.0
        %1211 = vmatprep.mubr.f32.mxu0 0.0
        %1212 = vmatmul.mubr.f32.gmra.mrb[0].mxu0 %v1139
        %v1213 = vpop.f32.mrb[0].mxu0
        %v1214 = vadd.f32 0.0, %v1213
        %v1215 = vpop.f32.mrb[0].mxu0
        %v1216 = vadd.f32 0.0, %v1215
        %1217 = vdwg.mxu0
        %v1218 = vadd.f32 %v1121, %v1214
        %v1219 = vadd.f32 %v1122, %v1216
        %s1220 = scalar_lea.vmem %s3, 32
        %v1221 = vld [vmem:[%s1220] sm:$0xf]
        %1222 = vrot.lane.b32.xlu0 %v452, 111
        %v1223 = vpop.permute.xlu0 %1222
        %1224 = vrot.lane.b32.xlu0 %v454, 111
        %v1225 = vpop.permute.xlu0 %1224
        %vm1226 = vcmp.lt.s32.totalorder %v333, 111
        %v1227 = vsel %vm1226, %v1223, %v1225
        %v1228 = vsel %vm1226, %v1225, %v1223
        %vm1229 = vmand %vm361, %vm365
        %vm1230 = vmand %vm362, %vm366
        %v1231 = vsel %vm1229, 1, 0
        %v1232 = vsel %vm1230, 1, 0
        %vm1233 = vcmp.eq.s32.totalorder %v1231, 1
        %vm1234 = vcmp.eq.s32.totalorder %v1232, 1
        %v1235 = vsel %vm1233, %v1227, 0.0
        %v1236 = vsel %vm1234, %v1228, 0.0
        %v1238 = vsel %vm376, %v1221, 0
        %v1241 = vsel %vm380, %v1235, 0
        %v1244 = vsel %vm380, %v1236, 0
        %1246 = vmatprep.subr.mxu0 %v1244
        %1247 = vmatpush1.msra.mxu0 %v1241
        %1248 = vmatprep.subr.mxu0 0.0
        %1249 = vmatpush1.msra.mxu0 0.0
        %1250 = vmatprep.subr.mxu0 0.0
        %1251 = vmatpush1.msra.mxu0 0.0
        %1252 = vmatprep.subr.mxu0 0.0
        %1253 = vmatpush1.msra.mxu0 0.0
        %1254 = vmatprep.subr.mxu0 0.0
        %1255 = vmatpush1.msra.mxu0 0.0
        %1256 = vmatprep.subr.mxu0 0.0
        %1257 = vmatpush1.msra.mxu0 0.0
        %1258 = vmatprep.subr.mxu0 0.0
        %1259 = vmatpush1.msra.mxu0 0.0
        %1260 = vmatprep.subr.mxu0 0.0
        %1261 = vmatpush1.msra.mxu0 0.0
        %1262 = vmatprep.subr.mxu0 0.0
        %1263 = vmatpush1.msra.mxu0 0.0
        %1264 = vmatprep.subr.mxu0 0.0
        %1265 = vmatpush1.msra.mxu0 0.0
        %1266 = vmatprep.subr.mxu0 0.0
        %1267 = vmatpush1.msra.mxu0 0.0
        %1268 = vmatprep.subr.mxu0 0.0
        %1269 = vmatpush1.msra.mxu0 0.0
        %1270 = vmatprep.subr.mxu0 0.0
        %1271 = vmatpush1.msra.mxu0 0.0
        %1272 = vmatprep.subr.mxu0 0.0
        %1273 = vmatpush1.msra.mxu0 0.0
        %1274 = vmatprep.subr.mxu0 0.0
        %1275 = vmatpush1.msra.mxu0 0.0
        %1276 = vmatprep.subr.mxu0 0.0
        %1277 = vmatpush1.msra.mxu0 0.0
        %1278 = vmatprep.subr.mxu0 0.0
        %1279 = vmatpush1.msra.mxu0 0.0
        %1280 = vmatprep.subr.mxu0 0.0
        %1281 = vmatpush1.msra.mxu0 0.0
        %1282 = vmatprep.subr.mxu0 0.0
        %1283 = vmatpush1.msra.mxu0 0.0
        %1284 = vmatprep.subr.mxu0 0.0
        %1285 = vmatpush1.msra.mxu0 0.0
        %1286 = vmatprep.subr.mxu0 0.0
        %1287 = vmatpush1.msra.mxu0 0.0
        %1288 = vmatprep.subr.mxu0 0.0
        %1289 = vmatpush1.msra.mxu0 0.0
        %1290 = vmatprep.subr.mxu0 0.0
        %1291 = vmatpush1.msra.mxu0 0.0
        %1292 = vmatprep.subr.mxu0 0.0
        %1293 = vmatpush1.msra.mxu0 0.0
        %1294 = vmatprep.subr.mxu0 0.0
        %1295 = vmatpush1.msra.mxu0 0.0
        %1296 = vmatprep.subr.mxu0 0.0
        %1297 = vmatpush1.msra.mxu0 0.0
        %1298 = vmatprep.subr.mxu0 0.0
        %1299 = vmatpush1.msra.mxu0 0.0
        %1300 = vmatprep.subr.mxu0 0.0
        %1301 = vmatpush1.msra.mxu0 0.0
        %1302 = vmatprep.subr.mxu0 0.0
        %1303 = vmatpush1.msra.mxu0 0.0
        %1304 = vmatprep.subr.mxu0 0.0
        %1305 = vmatpush1.msra.mxu0 0.0
        %1306 = vmatprep.subr.mxu0 0.0
        %1307 = vmatpush1.msra.mxu0 0.0
        %1308 = vmatprep.subr.mxu0 0.0
        %1309 = vmatpush1.msra.mxu0 0.0
        %1310 = vmatprep.mubr.f32.mxu0 0.0
        %1311 = vmatmul.mubr.f32.gmra.mrb[0].mxu0 %v1238
        %v1312 = vpop.f32.mrb[0].mxu0
        %v1313 = vadd.f32 0.0, %v1312
        %v1314 = vpop.f32.mrb[0].mxu0
        %v1315 = vadd.f32 0.0, %v1314
        %1316 = vdwg.mxu0
        %v1317 = vadd.f32 %v1218, %v1313
        %v1318 = vadd.f32 %v1219, %v1315
        %v1319 = vld [vmem:[%s4] sm:$0xf]
        %1321 = vset.pattern.permute.xlu0 0
        %1322 = vperm.xlu0 %1321, %v1319
        %v1323 = vpop.permute.xlu0 %1322
        %v1325 = vadd.f32 %v1317, %v1323
        %v1326 = vadd.f32 %v1318, %v1323
        %v1327 = vld [vmem:[%s5] sm:$0xf]
        %1328 = vrot.lane.b32.xlu0 %v1325, 16
        %v1329 = vpop.permute.xlu0 %1328
        %1330 = vrot.lane.b32.xlu0 %v1326, 16
        %v1331 = vpop.permute.xlu0 %1330
        %v1332 = vsel %vm478, %v1329, %v1331
        %v1333 = vsel %vm478, %v1331, %v1329
        %v1334 = vsel %vm483, %v1333, 0.0
        %v1335 = vsel %vm484, %v1332, 0.0
        %1336 = vrot.lane.b32.xlu0 %v1325, 112
        %v1337 = vpop.permute.xlu0 %1336
        %1338 = vrot.lane.b32.xlu0 %v1326, 112
        %v1339 = vpop.permute.xlu0 %1338
        %v1340 = vsel %vm1129, %v1337, %v1339
        %v1341 = vsel %vm1129, %v1339, %v1337
        %v1342 = vsel %vm1134, %v1340, 0.0
        %v1343 = vsel %vm1135, %v1341, 0.0
        %1345 = vset.pattern.permute.xlu0 0
        %1346 = vperm.xlu0 %1345, %v1327
        %v1347 = vpop.permute.xlu0 %1346
        %v1349 = vmul.f32 %v1334, %v1347
        %v1350 = vmul.f32 %v1335, %v1347
        %1351 = vset.pattern.permute.xlu0 1
        %1352 = vperm.xlu0 %1351, %v1327
        %v1353 = vpop.permute.xlu0 %1352
        %v1355 = vmul.f32 %v1325, %v1353
        %v1356 = vmul.f32 %v1326, %v1353
        %v1357 = vadd.f32 %v1349, %v1355
        %v1358 = vadd.f32 %v1350, %v1356
        %1359 = vset.pattern.permute.xlu0 2
        %1360 = vperm.xlu0 %1359, %v1327
        %v1361 = vpop.permute.xlu0 %1360
        %v1363 = vmul.f32 %v1342, %v1361
        %v1364 = vmul.f32 %v1343, %v1361
        %v1365 = vadd.f32 %v1357, %v1363
        %v1366 = vadd.f32 %v1358, %v1364
        %v1367 = vld [vmem:[%s6] sm:$0xf]
        %1369 = vset.pattern.permute.xlu0 0
        %1370 = vperm.xlu0 %1369, %v1367
        %v1371 = vpop.permute.xlu0 %1370
        %v1373 = vadd.f32 %v1365, %v1371
        %v1374 = vadd.f32 %v1366, %v1371
        %v1375 = vld [vmem:[%s7] sm:$0xf]
        %1376 = vrot.lane.b32.xlu0 %v1373, 1
        %v1377 = vpop.permute.xlu0 %1376
        %1378 = vrot.lane.b32.xlu0 %v1374, 1
        %v1379 = vpop.permute.xlu0 %1378
        %v1380 = vsel %vm752, %v1377, %v1379
        %v1381 = vsel %vm752, %v1379, %v1377
        %v1382 = vsel %vm757, %v1381, 0.0
        %v1383 = vsel %vm758, %v1380, 0.0
        %1384 = vrot.lane.b32.xlu0 %v1373, 127
        %v1385 = vpop.permute.xlu0 %1384
        %1386 = vrot.lane.b32.xlu0 %v1374, 127
        %v1387 = vpop.permute.xlu0 %1386
        %v1388 = vsel %vm933, %v1385, %v1387
        %v1389 = vsel %vm933, %v1387, %v1385
        %v1390 = vsel %vm938, %v1388, 0.0
        %v1391 = vsel %vm939, %v1389, 0.0
        %1393 = vset.pattern.permute.xlu0 0
        %1394 = vperm.xlu0 %1393, %v1375
        %v1395 = vpop.permute.xlu0 %1394
        %v1397 = vmul.f32 %v1382, %v1395
        %v1398 = vmul.f32 %v1383, %v1395
        %1399 = vset.pattern.permute.xlu0 1
        %1400 = vperm.xlu0 %1399, %v1375
        %v1401 = vpop.permute.xlu0 %1400
        %v1403 = vmul.f32 %v1373, %v1401
        %v1404 = vmul.f32 %v1374, %v1401
        %v1405 = vadd.f32 %v1397, %v1403
        %v1406 = vadd.f32 %v1398, %v1404
        %1407 = vset.pattern.permute.xlu0 2
        %1408 = vperm.xlu0 %1407, %v1375
        %v1409 = vpop.permute.xlu0 %1408
        %v1411 = vmul.f32 %v1390, %v1409
        %v1412 = vmul.f32 %v1391, %v1409
        %v1413 = vadd.f32 %v1405, %v1411
        %v1414 = vadd.f32 %v1406, %v1412
        %v1415 = vld [vmem:[%s8] sm:$0xf]
        %1417 = vset.pattern.permute.xlu0 0
        %1418 = vperm.xlu0 %1417, %v1415
        %v1419 = vpop.permute.xlu0 %1418
        %v1421 = vadd.f32 %v1413, %v1419
        %v1422 = vadd.f32 %v1414, %v1419
        %v1423 = vadd.f32 %v452, %v1421
        %v1424 = vadd.f32 %v454, %v1422
        %v1427 = vcombine.low %v1423, %v1424
        %1429 = vst [vmem:[%s325] sm:$0xff] %v1427
        %s1430 = sand.u32 %s225, 1
        %s1431 = scalar_lea.sflag [#allocation3], %s1430
        %s1432 = sand.u32 %s225, 1
        %s1433 = smul.addr %s1432, 8
        %s1434 = scalar_lea.vmem [#allocation2], %s1433
        // Predicated region
        $region57: #{tpu_custom_call.1} parent=55 // pred_check
          %p1435 = pneg %p235
        $region58: #{tpu_custom_call.1} parent=55 // pred_check_branch
          %1437 = sbr.rel (%p1435) target = $region60
        $region59: #{tpu_custom_call.1} parent=55 // pred_region
          %s1439 = ssub.s32 128, 128
          %1440 = vsyncadd %s1431, %s1439
          %s1441 = smul.addr %s23, 2
          %s1442 = smul.addr %s1441, 64
          %s1443 = scalar_lea.hbm %s9, %s1442
          %s1445 = sshll.u32 %s1434, 4
          %s1446 = int_to_ptr.vmem [resolvable:$true] %s1445
          %1448 = dma.vmem_to_hbm [thread:$0]  %s1446, 128, %s1443, %s1431
        $region60: #{tpu_custom_call.1} parent=55 // pred_fallthru
          _
      $region56: #{tpu_custom_call.1} parent=5 // pred_fallthru
        _
      %p1449 = scmp.le.s32.totalorder 2, %s18
      // Predicated region
      $region61: #{tpu_custom_call.1} parent=5 // pred_check
        %p1450 = pneg %p1449
      $region62: #{tpu_custom_call.1} parent=5 // pred_check_branch
        %1452 = sbr.rel (%p1450) target = $region64
      $region63: #{tpu_custom_call.1} parent=5 // pred_region
        %s1453 = ssub.s32 %s18, 2
        // Predicated region
        $region65: #{tpu_custom_call.1} parent=63 // pred_check
          %p1454 = pneg %p241
        $region66: #{tpu_custom_call.1} parent=63 // pred_check_branch
          %1456 = sbr.rel (%p1454) target = $region68
        $region67: #{tpu_custom_call.1} parent=63 // pred_region
          %s1457 = sand.u32 %s226, 1
          %s1458 = scalar_lea.sflag [#allocation3], %s1457
          %s1459 = sand.u32 %s226, 1
          %s1460 = smul.addr %s1459, 8
          %s1461 = scalar_lea.vmem [#allocation2], %s1460
          %1462 = dma.done %s1458, 128
        $region68: #{tpu_custom_call.1} parent=63 // pred_fallthru
          _
      $region64: #{tpu_custom_call.1} parent=5 // pred_fallthru
        _
    $region6: #{tpu_custom_call.1} parent=1 // loop_footer
      %s22 = sadd.s32 1, %s18
    $region7: #{tpu_custom_call.1} parent=1 // loop_footer_branch
      %17 = sbr.rel target = $region3
    $region8: #{tpu_custom_call.1} parent=1 // loop_exit
      _
    %1463 = vsyncpa [#allocation3], 1
    %s1464 = scalar_lea.sflag [#allocation3], 1
    %1465 = vsyncpa %s1464, 1

</llo_original>
